<compile_context>
chip_gen: v7x
topology: tpu7x:2x2x1
jax: 0.10.0
libtpu: 0.0.40
codegen_flags: <defaults>
</compile_context>

<pallas_src>
import jax
import jax.numpy as jnp
from jax.experimental import pallas as pl
from jax.experimental.pallas import tpu as pltpu


def _hnn_kernel(xt_ref, w1_ref, b1_ref, w2_ref, w2t_ref, b2_ref, w3_ref, w1gt_ref,
                out_ref):
    xt = xt_ref[...]        # (D, TB)  feature-major: batch on lanes
    w1 = w1_ref[...]        # (H, D)
    b1 = b1_ref[...]        # (H, 1)   f32
    w2 = w2_ref[...]        # (H, H)
    w2t = w2t_ref[...]      # (H, H)   = W2^T
    b2 = b2_ref[...]        # (H, 1)   f32
    w3 = w3_ref[...]        # (H, 1)   f32 (lin_3 weight, out_dim = 1)
    w1gt = w1gt_ref[...]    # (D, H)   = [W1[:, D/2:], -W1[:, :D/2]]^T
    mmdt = w1.dtype         # MXU operand dtype (f32 or bf16)

    # ---- forward activations (only needed for the relu' selects) ----
    z1 = jnp.dot(w1, xt, preferred_element_type=jnp.float32) + b1           # (H, TB)
    h1 = jnp.maximum(z1, 0.0)
    z2 = jnp.dot(w2, h1.astype(mmdt), preferred_element_type=jnp.float32) + b2

    # ---- analytic gradient, symplectic permute/negate folded into w1gt ----
    g2 = jnp.where(z2 > 0.0, w3, 0.0)                                       # (H, TB)
    g_h1 = w3 + jnp.dot(w2t, g2.astype(mmdt), preferred_element_type=jnp.float32)
    g1 = jnp.where(z1 > 0.0, g_h1, 0.0)
    out_ref[...] = jnp.dot(w1gt, g1.astype(mmdt),
                           preferred_element_type=jnp.float32).astype(out_ref.dtype)


def hnn_prepare_params(w1, b1, w2, b2, w3, *, compute_dtype=jnp.float32):
    """One-time parameter prep (hoisted out of the per-step hot path)."""
    H, D = w1.shape
    half = D // 2
    # Folded symplectic rearrangement: out^T = [W1[:, half:], -W1[:, :half]]^T @ g1^T
    w1gt = jnp.concatenate([w1[:, half:], -w1[:, :half]], axis=1).T        # (D, H)
    return {
        "w1": w1.astype(compute_dtype),                                     # (H, D)
        "b1": b1.reshape(H, 1).astype(jnp.float32),
        "w2": w2.astype(compute_dtype),                                     # (H, H)
        "w2t": w2.T.astype(compute_dtype),                                  # (H, H)
        "b2": b2.reshape(H, 1).astype(jnp.float32),
        "w3": w3.reshape(H, 1).astype(jnp.float32),
        "w1gt": w1gt.astype(compute_dtype),                                 # (D, H)
    }


def _pick_batch_tile(B, block_b):
    """Lane-aligned batch tile with >= ~4 grid steps for non-trivial B."""
    if B <= 128:
        return B                                   # single full tile (block dim == array dim)
    block_b = max(128, (block_b // 128) * 128)
    tb = -(-B // 4)                                # aim for >= 4 grid steps
    tb = ((tb + 127) // 128) * 128                 # multiple of 128 -> batch fills lanes
    return max(128, min(tb, block_b))


def hnn_forward(x, params, *, block_b=512):
    B, D = x.shape
    H = params["w1"].shape[0]
    cdt = params["w1"].dtype
    itm = jnp.dtype(cdt).itemsize

    TB = _pick_batch_tile(B, block_b)
    grid = (pl.cdiv(B, TB),)

    # Feature-major input so batch maps to the 128-lane axis inside the kernel.
    xt = x.T.astype(cdt)                                                    # (D, B)

    # VMEM budget: weights (+biases) + double-buffered x/out tiles + f32 intermediates.
    param_bytes = (2 * H * H + 2 * D * H) * itm + 3 * H * 4
    io_bytes = 2 * 2 * D * TB * (itm + 4)
    act_bytes = 6 * H * TB * 4
    est = 2 * param_bytes + io_bytes + act_bytes
    vmem_limit = int(min(max(2 * est, 16 << 20), 64 << 20))                 # v7x-safe cap

    cost = pl.CostEstimate(
        flops=2 * B * (2 * D * H + 2 * H * H),
        transcendentals=0,
        bytes_accessed=B * D * (itm + 4) + param_bytes)

    def build(single_buffer_params):
        if single_buffer_params:
            const = lambda shape: pl.BlockSpec(shape, lambda i: (0, 0),
                                               pipeline_mode=pl.Buffered(1))
        else:
            const = lambda shape: pl.BlockSpec(shape, lambda i: (0, 0))
        return pl.pallas_call(
            _hnn_kernel,
            out_shape=jax.ShapeDtypeStruct((D, B), jnp.float32),
            grid=grid,
            in_specs=[
                pl.BlockSpec((D, TB), lambda i: (0, i)),   # x^T streamed, lane-dense
                const((H, D)),                             # W1
                const((H, 1)),                             # b1
                const((H, H)),                             # W2
                const((H, H)),                             # W2^T
                const((H, 1)),                             # b2
                const((H, 1)),                             # w3
                const((D, H)),                             # W1g^T (permuted/negated)
            ],
            out_specs=pl.BlockSpec((D, TB), lambda i: (0, i)),
            compiler_params=pltpu.CompilerParams(
                dimension_semantics=("parallel",),         # megacore sharding on v7x
                vmem_limit_bytes=vmem_limit),
            cost_estimate=cost,
        )

    args = (xt, params["w1"], params["b1"], params["w2"], params["w2t"],
            params["b2"], params["w3"], params["w1gt"])
    try:
        out_t = build(True)(*args)
    except Exception:
        # pl.Buffered(1) (single-buffered invariant params) not supported by this
        # jax version -> fall back to default double buffering (same semantics).
        out_t = build(False)(*args)
    return out_t.T                                                          # (B, D)


# ---------------- pure-JAX reference (jax.grad, mirrors PyTorch autograd) ----------------
def _mlp_scalar(x, w1, b1, w2, b2, w3, b3):
    h1 = jax.nn.relu(x @ w1.T + b1)
    h = h1 + jax.nn.relu(h1 @ w2.T + b2)
    y = h @ w3.T + b3
    return y[..., 0]


def hnn_reference(x, w1, b1, w2, b2, w3, b3):
    g = jax.grad(lambda xx: jnp.sum(_mlp_scalar(xx, w1, b1, w2, b2, w3, b3)))(x)
    half = g.shape[-1] // 2
    dHdq, dHdp = g[:, :half], g[:, half:]
    return jnp.concatenate([dHdp, -dHdq], axis=-1)


if __name__ == "__main__":
    # Small shapes consistent with the module (input_dim must be even for the q/p split).
    # B=512 so the batch grid has 4 lane-aligned tiles of 128.
    B, D, HID = 512, 4, 32

    key = jax.random.PRNGKey(0)
    kx, k1, k2, k3, k4, k5, k6 = jax.random.split(key, 7)
    x = jax.random.normal(kx, (B, D), dtype=jnp.float32)

    # Deterministic parameter init (uniform, PyTorch Linear-like fan-in scaling).
    def lin_init(kw, kb, out_f, in_f):
        bound = 1.0 / (in_f ** 0.5)
        w = jax.random.uniform(kw, (out_f, in_f), jnp.float32, -bound, bound)
        b = jax.random.uniform(kb, (out_f,), jnp.float32, -bound, bound)
        return w, b

    w1, b1 = lin_init(k1, k2, HID, D)
    w2, b2 = lin_init(k3, k4, HID, HID)
    w3, b3 = lin_init(k5, k6, 1, HID)

    # Parameter prep done ONCE (not per forward call).
    params = hnn_prepare_params(w1, b1, w2, b2, w3)
    out = jax.block_until_ready(hnn_forward(x, params))

    ref = hnn_reference(x, w1, b1, w2, b2, w3, b3)
    assert out.shape == (B, D)
    err = jnp.max(jnp.abs(out - ref))
    assert jnp.allclose(out, ref, atol=2e-5, rtol=2e-5), f"max abs err = {err}"

    # Optional lower-precision MXU path (v6e/v7x): bf16 operands, f32 accumulation.
    # Not numerically asserted against autograd (weight quantization can flip relu' masks).
    params_bf16 = hnn_prepare_params(w1, b1, w2, b2, w3, compute_dtype=jnp.bfloat16)
    out_bf16 = jax.block_until_ready(hnn_forward(x, params_bf16))
    assert out_bf16.shape == (B, D) and bool(jnp.all(jnp.isfinite(out_bf16)))

    print("KERNEL_OK")
</pallas_src>

<mosaic_0001>
module attributes {stable_mosaic.version = 11 : i64} {
  func.func @_hnn_kernel(%arg0: i32, %arg1: memref<4x128xf32, #tpu.memory_space<vmem>>, %arg2: memref<32x4xf32, #tpu.memory_space<vmem>>, %arg3: memref<32x1xf32, #tpu.memory_space<vmem>>, %arg4: memref<32x32xf32, #tpu.memory_space<vmem>>, %arg5: memref<32x32xf32, #tpu.memory_space<vmem>>, %arg6: memref<32x1xf32, #tpu.memory_space<vmem>>, %arg7: memref<32x1xf32, #tpu.memory_space<vmem>>, %arg8: memref<4x32xf32, #tpu.memory_space<vmem>>, %arg9: memref<4x128xf32, #tpu.memory_space<vmem>>) attributes {dimension_semantics = [#tpu.dimension_semantics<parallel>], iteration_bounds = array<i64: 4>, scalar_prefetch = 0 : i64, scratch_operands = 0 : i64, tpu.core_type = #tpu.core_type<tc>, window_params = [{transform_indices = @transform_0, window_bounds = array<i64: 4, 128>}, {pipeline_mode = #tpu.pipeline_mode<synchronous>, transform_indices = @transform_1, window_bounds = array<i64: 32, 4>}, {pipeline_mode = #tpu.pipeline_mode<synchronous>, transform_indices = @transform_2, window_bounds = array<i64: 32, 1>}, {pipeline_mode = #tpu.pipeline_mode<synchronous>, transform_indices = @transform_3, window_bounds = array<i64: 32, 32>}, {pipeline_mode = #tpu.pipeline_mode<synchronous>, transform_indices = @transform_4, window_bounds = array<i64: 32, 32>}, {pipeline_mode = #tpu.pipeline_mode<synchronous>, transform_indices = @transform_5, window_bounds = array<i64: 32, 1>}, {pipeline_mode = #tpu.pipeline_mode<synchronous>, transform_indices = @transform_6, window_bounds = array<i64: 32, 1>}, {pipeline_mode = #tpu.pipeline_mode<synchronous>, transform_indices = @transform_7, window_bounds = array<i64: 4, 32>}, {transform_indices = @transform_8, window_bounds = array<i64: 4, 128>}]} {
    %c0 = arith.constant 0 : index
    %c0_0 = arith.constant 0 : index
    %0 = vector.load %arg1[%c0, %c0_0] : memref<4x128xf32, #tpu.memory_space<vmem>>, vector<4x128xf32>
    %c0_1 = arith.constant 0 : index
    %c0_2 = arith.constant 0 : index
    %1 = vector.load %arg2[%c0_1, %c0_2] : memref<32x4xf32, #tpu.memory_space<vmem>>, vector<32x4xf32>
    %c0_3 = arith.constant 0 : index
    %c0_4 = arith.constant 0 : index
    %2 = vector.load %arg3[%c0_3, %c0_4] : memref<32x1xf32, #tpu.memory_space<vmem>>, vector<32x1xf32>
    %c0_5 = arith.constant 0 : index
    %c0_6 = arith.constant 0 : index
    %3 = vector.load %arg4[%c0_5, %c0_6] : memref<32x32xf32, #tpu.memory_space<vmem>>, vector<32x32xf32>
    %c0_7 = arith.constant 0 : index
    %c0_8 = arith.constant 0 : index
    %4 = vector.load %arg5[%c0_7, %c0_8] : memref<32x32xf32, #tpu.memory_space<vmem>>, vector<32x32xf32>
    %c0_9 = arith.constant 0 : index
    %c0_10 = arith.constant 0 : index
    %5 = vector.load %arg6[%c0_9, %c0_10] : memref<32x1xf32, #tpu.memory_space<vmem>>, vector<32x1xf32>
    %c0_11 = arith.constant 0 : index
    %c0_12 = arith.constant 0 : index
    %6 = vector.load %arg7[%c0_11, %c0_12] : memref<32x1xf32, #tpu.memory_space<vmem>>, vector<32x1xf32>
    %c0_13 = arith.constant 0 : index
    %c0_14 = arith.constant 0 : index
    %7 = vector.load %arg8[%c0_13, %c0_14] : memref<4x32xf32, #tpu.memory_space<vmem>>, vector<4x32xf32>
    %cst = arith.constant dense<0.000000e+00> : vector<32x128xf32>
    %8 = tpu.matmul %1, %0, %cst {dimension_numbers = #tpu.dot_dimension_numbers<[1], [0], [0], [1], [0, 0, 1, 1], [], []>} : vector<32x4xf32>, vector<4x128xf32>, vector<32x128xf32> -> vector<32x128xf32>
    %9 = vector.broadcast %2 : vector<32x1xf32> to vector<32x128xf32>
    %10 = arith.addf %8, %9 : vector<32x128xf32>
    %cst_15 = arith.constant 0.000000e+00 : f32
    %11 = vector.broadcast %cst_15 : f32 to vector<32x128xf32>
    %12 = arith.maximumf %10, %11 : vector<32x128xf32>
    %cst_16 = arith.constant dense<0.000000e+00> : vector<32x128xf32>
    %13 = tpu.matmul %3, %12, %cst_16 {dimension_numbers = #tpu.dot_dimension_numbers<[1], [0], [0], [1], [0, 0, 1, 1], [], []>} : vector<32x32xf32>, vector<32x128xf32>, vector<32x128xf32> -> vector<32x128xf32>
    %14 = vector.broadcast %5 : vector<32x1xf32> to vector<32x128xf32>
    %15 = arith.addf %13, %14 : vector<32x128xf32>
    %cst_17 = arith.constant 0.000000e+00 : f32
    %16 = vector.broadcast %cst_17 : f32 to vector<32x128xf32>
    %17 = arith.cmpf ogt, %15, %16 : vector<32x128xf32>
    %cst_18 = arith.constant 0.000000e+00 : f32
    %18 = vector.shape_cast %6 : vector<32x1xf32> to vector<32x1xf32>
    %19 = vector.broadcast %18 : vector<32x1xf32> to vector<32x128xf32>
    %20 = vector.broadcast %cst_18 : f32 to vector<32x128xf32>
    %21 = arith.select %17, %19, %20 : vector<32x128xi1>, vector<32x128xf32>
    %cst_19 = arith.constant dense<0.000000e+00> : vector<32x128xf32>
    %22 = tpu.matmul %4, %21, %cst_19 {dimension_numbers = #tpu.dot_dimension_numbers<[1], [0], [0], [1], [0, 0, 1, 1], [], []>} : vector<32x32xf32>, vector<32x128xf32>, vector<32x128xf32> -> vector<32x128xf32>
    %23 = vector.broadcast %6 : vector<32x1xf32> to vector<32x128xf32>
    %24 = arith.addf %23, %22 : vector<32x128xf32>
    %cst_20 = arith.constant 0.000000e+00 : f32
    %25 = vector.broadcast %cst_20 : f32 to vector<32x128xf32>
    %26 = arith.cmpf ogt, %10, %25 : vector<32x128xf32>
    %cst_21 = arith.constant 0.000000e+00 : f32
    %27 = vector.broadcast %cst_21 : f32 to vector<32x128xf32>
    %28 = arith.select %26, %24, %27 : vector<32x128xi1>, vector<32x128xf32>
    %cst_22 = arith.constant dense<0.000000e+00> : vector<4x128xf32>
    %29 = tpu.matmul %7, %28, %cst_22 {dimension_numbers = #tpu.dot_dimension_numbers<[1], [0], [0], [1], [0, 0, 1, 1], [], []>} : vector<4x32xf32>, vector<32x128xf32>, vector<4x128xf32> -> vector<4x128xf32>
    %c0_23 = arith.constant 0 : index
    %c0_24 = arith.constant 0 : index
    %30 = vector.load %arg9[%c0_23, %c0_24] : memref<4x128xf32, #tpu.memory_space<vmem>>, vector<4x128xf32>
    tpu.vector_store %arg9[%c0_23, %c0_24], %29 {strides = array<i32>} : memref<4x128xf32, #tpu.memory_space<vmem>>, vector<4x128xf32>,
    return
  }
  func.func @transform_0(%arg0: i32) -> (i32, i32) {
    %c0_i32 = arith.constant 0 : i32
    %c0_i32_0 = arith.constant 0 : i32
    return %c0_i32, %arg0 : i32, i32
  }
  func.func @transform_1(%arg0: i32) -> (i32, i32) {
    %c0_i32 = arith.constant 0 : i32
    %c0_i32_0 = arith.constant 0 : i32
    %c0_i32_1 = arith.constant 0 : i32
    return %c0_i32, %c0_i32_0 : i32, i32
  }
  func.func @transform_2(%arg0: i32) -> (i32, i32) {
    %c0_i32 = arith.constant 0 : i32
    %c0_i32_0 = arith.constant 0 : i32
    %c0_i32_1 = arith.constant 0 : i32
    return %c0_i32, %c0_i32_0 : i32, i32
  }
  func.func @transform_3(%arg0: i32) -> (i32, i32) {
    %c0_i32 = arith.constant 0 : i32
    %c0_i32_0 = arith.constant 0 : i32
    %c0_i32_1 = arith.constant 0 : i32
    return %c0_i32, %c0_i32_0 : i32, i32
  }
  func.func @transform_4(%arg0: i32) -> (i32, i32) {
    %c0_i32 = arith.constant 0 : i32
    %c0_i32_0 = arith.constant 0 : i32
    %c0_i32_1 = arith.constant 0 : i32
    return %c0_i32, %c0_i32_0 : i32, i32
  }
  func.func @transform_5(%arg0: i32) -> (i32, i32) {
    %c0_i32 = arith.constant 0 : i32
    %c0_i32_0 = arith.constant 0 : i32
    %c0_i32_1 = arith.constant 0 : i32
    return %c0_i32, %c0_i32_0 : i32, i32
  }
  func.func @transform_6(%arg0: i32) -> (i32, i32) {
    %c0_i32 = arith.constant 0 : i32
    %c0_i32_0 = arith.constant 0 : i32
    %c0_i32_1 = arith.constant 0 : i32
    return %c0_i32, %c0_i32_0 : i32, i32
  }
  func.func @transform_7(%arg0: i32) -> (i32, i32) {
    %c0_i32 = arith.constant 0 : i32
    %c0_i32_0 = arith.constant 0 : i32
    %c0_i32_1 = arith.constant 0 : i32
    return %c0_i32, %c0_i32_0 : i32, i32
  }
  func.func @transform_8(%arg0: i32) -> (i32, i32) {
    %c0_i32 = arith.constant 0 : i32
    %c0_i32_0 = arith.constant 0 : i32
    return %c0_i32, %arg0 : i32, i32
  }
}

module attributes {stable_mosaic.version = 11 : i64} {
  func.func @_hnn_kernel(%arg0: i32, %arg1: memref<4x128xf32, #tpu.memory_space<vmem>>, %arg2: memref<32x4xf32, #tpu.memory_space<vmem>>, %arg3: memref<32x1xf32, #tpu.memory_space<vmem>>, %arg4: memref<32x32xf32, #tpu.memory_space<vmem>>, %arg5: memref<32x32xf32, #tpu.memory_space<vmem>>, %arg6: memref<32x1xf32, #tpu.memory_space<vmem>>, %arg7: memref<32x1xf32, #tpu.memory_space<vmem>>, %arg8: memref<4x32xf32, #tpu.memory_space<vmem>>, %arg9: memref<4x128xf32, #tpu.memory_space<vmem>>) attributes {dimension_semantics = [#tpu.dimension_semantics<parallel>], iteration_bounds = array<i64: 4>, scalar_prefetch = 0 : i64, scratch_operands = 0 : i64, tpu.core_type = #tpu.core_type<tc>, window_params = [{transform_indices = @transform_0, window_bounds = array<i64: 4, 128>}, {pipeline_mode = #tpu.pipeline_mode<synchronous>, transform_indices = @transform_1, window_bounds = array<i64: 32, 4>}, {pipeline_mode = #tpu.pipeline_mode<synchronous>, transform_indices = @transform_2, window_bounds = array<i64: 32, 1>}, {pipeline_mode = #tpu.pipeline_mode<synchronous>, transform_indices = @transform_3, window_bounds = array<i64: 32, 32>}, {pipeline_mode = #tpu.pipeline_mode<synchronous>, transform_indices = @transform_4, window_bounds = array<i64: 32, 32>}, {pipeline_mode = #tpu.pipeline_mode<synchronous>, transform_indices = @transform_5, window_bounds = array<i64: 32, 1>}, {pipeline_mode = #tpu.pipeline_mode<synchronous>, transform_indices = @transform_6, window_bounds = array<i64: 32, 1>}, {pipeline_mode = #tpu.pipeline_mode<synchronous>, transform_indices = @transform_7, window_bounds = array<i64: 4, 32>}, {transform_indices = @transform_8, window_bounds = array<i64: 4, 128>}]} {
    %c0 = arith.constant 0 : index
    %c0_0 = arith.constant 0 : index
    %0 = vector.load %arg1[%c0, %c0_0] : memref<4x128xf32, #tpu.memory_space<vmem>>, vector<4x128xf32>
    %c0_1 = arith.constant 0 : index
    %c0_2 = arith.constant 0 : index
    %1 = vector.load %arg2[%c0_1, %c0_2] : memref<32x4xf32, #tpu.memory_space<vmem>>, vector<32x4xf32>
    %c0_3 = arith.constant 0 : index
    %c0_4 = arith.constant 0 : index
    %2 = vector.load %arg3[%c0_3, %c0_4] : memref<32x1xf32, #tpu.memory_space<vmem>>, vector<32x1xf32>
    %c0_5 = arith.constant 0 : index
    %c0_6 = arith.constant 0 : index
    %3 = vector.load %arg4[%c0_5, %c0_6] : memref<32x32xf32, #tpu.memory_space<vmem>>, vector<32x32xf32>
    %c0_7 = arith.constant 0 : index
    %c0_8 = arith.constant 0 : index
    %4 = vector.load %arg5[%c0_7, %c0_8] : memref<32x32xf32, #tpu.memory_space<vmem>>, vector<32x32xf32>
    %c0_9 = arith.constant 0 : index
    %c0_10 = arith.constant 0 : index
    %5 = vector.load %arg6[%c0_9, %c0_10] : memref<32x1xf32, #tpu.memory_space<vmem>>, vector<32x1xf32>
    %c0_11 = arith.constant 0 : index
    %c0_12 = arith.constant 0 : index
    %6 = vector.load %arg7[%c0_11, %c0_12] : memref<32x1xf32, #tpu.memory_space<vmem>>, vector<32x1xf32>
    %c0_13 = arith.constant 0 : index
    %c0_14 = arith.constant 0 : index
    %7 = vector.load %arg8[%c0_13, %c0_14] : memref<4x32xf32, #tpu.memory_space<vmem>>, vector<4x32xf32>
    %cst = arith.constant dense<0.000000e+00> : vector<32x128xf32>
    %8 = tpu.matmul %1, %0, %cst {dimension_numbers = #tpu.dot_dimension_numbers<[1], [0], [0], [1], [0, 0, 1, 1], [], []>} : vector<32x4xf32>, vector<4x128xf32>, vector<32x128xf32> -> vector<32x128xf32>
    %9 = vector.broadcast %2 : vector<32x1xf32> to vector<32x128xf32>
    %10 = arith.addf %8, %9 : vector<32x128xf32>
    %cst_15 = arith.constant 0.000000e+00 : f32
    %11 = vector.broadcast %cst_15 : f32 to vector<32x128xf32>
    %12 = arith.maximumf %10, %11 : vector<32x128xf32>
    %cst_16 = arith.constant dense<0.000000e+00> : vector<32x128xf32>
    %13 = tpu.matmul %3, %12, %cst_16 {dimension_numbers = #tpu.dot_dimension_numbers<[1], [0], [0], [1], [0, 0, 1, 1], [], []>} : vector<32x32xf32>, vector<32x128xf32>, vector<32x128xf32> -> vector<32x128xf32>
    %14 = vector.broadcast %5 : vector<32x1xf32> to vector<32x128xf32>
    %15 = arith.addf %13, %14 : vector<32x128xf32>
    %cst_17 = arith.constant 0.000000e+00 : f32
    %16 = vector.broadcast %cst_17 : f32 to vector<32x128xf32>
    %17 = arith.cmpf ogt, %15, %16 : vector<32x128xf32>
    %cst_18 = arith.constant 0.000000e+00 : f32
    %18 = vector.shape_cast %6 : vector<32x1xf32> to vector<32x1xf32>
    %19 = vector.broadcast %18 : vector<32x1xf32> to vector<32x128xf32>
    %20 = vector.broadcast %cst_18 : f32 to vector<32x128xf32>
    %21 = arith.select %17, %19, %20 : vector<32x128xi1>, vector<32x128xf32>
    %cst_19 = arith.constant dense<0.000000e+00> : vector<32x128xf32>
    %22 = tpu.matmul %4, %21, %cst_19 {dimension_numbers = #tpu.dot_dimension_numbers<[1], [0], [0], [1], [0, 0, 1, 1], [], []>} : vector<32x32xf32>, vector<32x128xf32>, vector<32x128xf32> -> vector<32x128xf32>
    %23 = vector.broadcast %6 : vector<32x1xf32> to vector<32x128xf32>
    %24 = arith.addf %23, %22 : vector<32x128xf32>
    %cst_20 = arith.constant 0.000000e+00 : f32
    %25 = vector.broadcast %cst_20 : f32 to vector<32x128xf32>
    %26 = arith.cmpf ogt, %10, %25 : vector<32x128xf32>
    %cst_21 = arith.constant 0.000000e+00 : f32
    %27 = vector.broadcast %cst_21 : f32 to vector<32x128xf32>
    %28 = arith.select %26, %24, %27 : vector<32x128xi1>, vector<32x128xf32>
    %cst_22 = arith.constant dense<0.000000e+00> : vector<4x128xf32>
    %29 = tpu.matmul %7, %28, %cst_22 {dimension_numbers = #tpu.dot_dimension_numbers<[1], [0], [0], [1], [0, 0, 1, 1], [], []>} : vector<4x32xf32>, vector<32x128xf32>, vector<4x128xf32> -> vector<4x128xf32>
    %c0_23 = arith.constant 0 : index
    %c0_24 = arith.constant 0 : index
    %30 = vector.load %arg9[%c0_23, %c0_24] : memref<4x128xf32, #tpu.memory_space<vmem>>, vector<4x128xf32>
    tpu.vector_store %arg9[%c0_23, %c0_24], %29 {strides = array<i32>} : memref<4x128xf32, #tpu.memory_space<vmem>>, vector<4x128xf32>,
    return
  }
  func.func @transform_0(%arg0: i32) -> (i32, i32) {
    %c0_i32 = arith.constant 0 : i32
    %c0_i32_0 = arith.constant 0 : i32
    return %c0_i32, %arg0 : i32, i32
  }
  func.func @transform_1(%arg0: i32) -> (i32, i32) {
    %c0_i32 = arith.constant 0 : i32
    %c0_i32_0 = arith.constant 0 : i32
    %c0_i32_1 = arith.constant 0 : i32
    return %c0_i32, %c0_i32_0 : i32, i32
  }
  func.func @transform_2(%arg0: i32) -> (i32, i32) {
    %c0_i32 = arith.constant 0 : i32
    %c0_i32_0 = arith.constant 0 : i32
    %c0_i32_1 = arith.constant 0 : i32
    return %c0_i32, %c0_i32_0 : i32, i32
  }
  func.func @transform_3(%arg0: i32) -> (i32, i32) {
    %c0_i32 = arith.constant 0 : i32
    %c0_i32_0 = arith.constant 0 : i32
    %c0_i32_1 = arith.constant 0 : i32
    return %c0_i32, %c0_i32_0 : i32, i32
  }
  func.func @transform_4(%arg0: i32) -> (i32, i32) {
    %c0_i32 = arith.constant 0 : i32
    %c0_i32_0 = arith.constant 0 : i32
    %c0_i32_1 = arith.constant 0 : i32
    return %c0_i32, %c0_i32_0 : i32, i32
  }
  func.func @transform_5(%arg0: i32) -> (i32, i32) {
    %c0_i32 = arith.constant 0 : i32
    %c0_i32_0 = arith.constant 0 : i32
    %c0_i32_1 = arith.constant 0 : i32
    return %c0_i32, %c0_i32_0 : i32, i32
  }
  func.func @transform_6(%arg0: i32) -> (i32, i32) {
    %c0_i32 = arith.constant 0 : i32
    %c0_i32_0 = arith.constant 0 : i32
    %c0_i32_1 = arith.constant 0 : i32
    return %c0_i32, %c0_i32_0 : i32, i32
  }
  func.func @transform_7(%arg0: i32) -> (i32, i32) {
    %c0_i32 = arith.constant 0 : i32
    %c0_i32_0 = arith.constant 0 : i32
    %c0_i32_1 = arith.constant 0 : i32
    return %c0_i32, %c0_i32_0 : i32, i32
  }
  func.func @transform_8(%arg0: i32) -> (i32, i32) {
    %c0_i32 = arith.constant 0 : i32
    %c0_i32_0 = arith.constant 0 : i32
    return %c0_i32, %arg0 : i32, i32
  }
}

</mosaic_0001>

<llo_original>
// kernel: tpu_custom_call.1
$region0: #{tpu_custom_call.1}
  #allocation0 [shape = 'u32[]', space=smem, size = 0x4, offset = 0x4, fixed_abs, tag = 'smem constant byte address 0x4 - core index']
  #allocation1 [shape = 'u32[144,128]{1,0:T(1,128)}', space=vmem, size = 0x12000, scoped, tag = 'internal scratch']
  %s0 = inlined_call_operand.vmem [shape: f32[4,512], index: 0, kind: input, shape index: {}]
  %s1 = inlined_call_operand.vmem [shape: f32[32,4], index: 1, kind: input, shape index: {}]
  %s2 = inlined_call_operand.vmem [shape: f32[32,1], index: 2, kind: input, shape index: {}]
  %s3 = inlined_call_operand.vmem [shape: f32[32,32], index: 3, kind: input, shape index: {}]
  %s4 = inlined_call_operand.vmem [shape: f32[32,32], index: 4, kind: input, shape index: {}]
  %s5 = inlined_call_operand.vmem [shape: f32[32,1], index: 5, kind: input, shape index: {}]
  %s6 = inlined_call_operand.vmem [shape: f32[32,1], index: 6, kind: input, shape index: {}]
  %s7 = inlined_call_operand.vmem [shape: f32[4,32], index: 7, kind: input, shape index: {}]
  %s8 = inlined_call_operand.hbm [shape: f32[4,512], index: 8, kind: output, shape index: {}]
  %s9 = sld [smem:[#allocation0]]
  $region65: #{tpu_custom_call.1} parent=0
    _
  %s11 = ssub.s32 1, %s9
  %s12 = scalar_select 0, %s11, %s9
  $region1: #{tpu_custom_call.1} parent=0
    #allocation2 [shape = 'u8[4096]{0}', space=vmem, size = 0x1000, scoped, tag = 'output window, operand 0']
    #allocation3 [shape = 's32[2]{0}', space=sflag, size = 0x8, scoped, tag = 'scoped memory for tpu_custom_call.1']
    %13 = vsyncpa [#allocation3], 0
    %s14 = scalar_lea.sflag [#allocation3], 1
    %15 = vsyncpa %s14, 0
    loop: start=0, step=1, limit=6
    $region2: #{tpu_custom_call.1} parent=1 // loop_pre_header
      _
    $region3: #{tpu_custom_call.1} parent=1 // loop_header
      %s17 = sphi 0, %s21
      %p18 = scmp.ge.s32.totalorder %s17, 6
      %s27 = sphi 0, %s29
      %s30 = sphi 0, %s27
      %s31 = sphi 0, %s30
      %s47 = sphi 0, %s31
      %s51 = sphi 0, %s51
      %s53 = sphi 0, %s51
      %s54 = sphi 0, %s53
      %s68 = sphi 0, %s54
      %s72 = sphi 0, %s72
      %s74 = sphi 0, %s72
      %s75 = sphi 0, %s74
      %s89 = sphi 0, %s75
      %s93 = sphi 0, %s93
      %s95 = sphi 0, %s93
      %s96 = sphi 0, %s95
      %s110 = sphi 0, %s96
      %s114 = sphi 0, %s114
      %s116 = sphi 0, %s114
      %s117 = sphi 0, %s116
      %s131 = sphi 0, %s117
      %s135 = sphi 0, %s135
      %s137 = sphi 0, %s135
      %s138 = sphi 0, %s137
      %s152 = sphi 0, %s138
      %s156 = sphi 0, %s156
      %s158 = sphi 0, %s156
      %s159 = sphi 0, %s158
      %s173 = sphi 0, %s159
      %s177 = sphi 0, %s177
      %s179 = sphi 0, %s177
      %s180 = sphi 0, %s179
      %s194 = sphi 0, %s180
      %s200 = sphi 0, %s202
      %s203 = sphi 0, %s200
      %s204 = sphi 0, %s203
      %s220 = sphi 0, %s204
    $region4: #{tpu_custom_call.1} parent=1 // loop_header_branch
      %20 = sbr.rel (%p18) target = $region8
    $region5: #{tpu_custom_call.1} parent=1 // loop_body
      %s22 = ssub.s32 %s17, 1
      %s23 = ssub.s32 %s17, 2
      %s24 = sadd.s32 %s17, 1
      %s25 = ssub.s32 %s17, %s24
      %p26 = scmp.eq.s32.totalorder %s25, 0
      %s28 = sadd.s32 %s27, 1
      %s29 = scalar_select %p26, %s27, %s28
      %p32 = pneg %p26
      %p33 = scmp.eq.s32.totalorder %s17, 3
      %p34 = por %p32, %p33
      %p35 = scmp.ne.s32.totalorder %s27, %s30
      %p36 = scmp.eq.s32.totalorder %s17, 0
      %p37 = por %p35, %p36
      %p38 = scmp.ne.s32.totalorder %s27, %s30
      %p39 = scmp.eq.s32.totalorder %s22, 3
      %p40 = por %p38, %p39
      %p41 = scmp.ne.s32.totalorder %s30, %s31
      %p42 = scmp.eq.s32.totalorder %s22, 0
      %p43 = por %p41, %p42
      %p44 = scmp.ne.s32.totalorder %s30, %s31
      %p45 = scmp.eq.s32.totalorder %s23, 3
      %p46 = por %p44, %p45
      %p48 = scmp.ne.s32.totalorder %s31, %s47
      %p49 = scmp.eq.s32.totalorder %s23, 0
      %p50 = por %p48, %p49
      %s52 = sadd.s32 %s51, 1
      %p55 = scmp.eq.s32.totalorder %s17, 3
      %p56 = scmp.ne.s32.totalorder %s51, %s53
      %p57 = scmp.eq.s32.totalorder %s17, 0
      %p58 = por %p56, %p57
      %p59 = scmp.ne.s32.totalorder %s51, %s53
      %p60 = scmp.eq.s32.totalorder %s22, 3
      %p61 = por %p59, %p60
      %p62 = scmp.ne.s32.totalorder %s53, %s54
      %p63 = scmp.eq.s32.totalorder %s22, 0
      %p64 = por %p62, %p63
      %p65 = scmp.ne.s32.totalorder %s53, %s54
      %p66 = scmp.eq.s32.totalorder %s23, 3
      %p67 = por %p65, %p66
      %p69 = scmp.ne.s32.totalorder %s54, %s68
      %p70 = scmp.eq.s32.totalorder %s23, 0
      %p71 = por %p69, %p70
      %s73 = sadd.s32 %s72, 1
      %p76 = scmp.eq.s32.totalorder %s17, 3
      %p77 = scmp.ne.s32.totalorder %s72, %s74
      %p78 = scmp.eq.s32.totalorder %s17, 0
      %p79 = por %p77, %p78
      %p80 = scmp.ne.s32.totalorder %s72, %s74
      %p81 = scmp.eq.s32.totalorder %s22, 3
      %p82 = por %p80, %p81
      %p83 = scmp.ne.s32.totalorder %s74, %s75
      %p84 = scmp.eq.s32.totalorder %s22, 0
      %p85 = por %p83, %p84
      %p86 = scmp.ne.s32.totalorder %s74, %s75
      %p87 = scmp.eq.s32.totalorder %s23, 3
      %p88 = por %p86, %p87
      %p90 = scmp.ne.s32.totalorder %s75, %s89
      %p91 = scmp.eq.s32.totalorder %s23, 0
      %p92 = por %p90, %p91
      %s94 = sadd.s32 %s93, 1
      %p97 = scmp.eq.s32.totalorder %s17, 3
      %p98 = scmp.ne.s32.totalorder %s93, %s95
      %p99 = scmp.eq.s32.totalorder %s17, 0
      %p100 = por %p98, %p99
      %p101 = scmp.ne.s32.totalorder %s93, %s95
      %p102 = scmp.eq.s32.totalorder %s22, 3
      %p103 = por %p101, %p102
      %p104 = scmp.ne.s32.totalorder %s95, %s96
      %p105 = scmp.eq.s32.totalorder %s22, 0
      %p106 = por %p104, %p105
      %p107 = scmp.ne.s32.totalorder %s95, %s96
      %p108 = scmp.eq.s32.totalorder %s23, 3
      %p109 = por %p107, %p108
      %p111 = scmp.ne.s32.totalorder %s96, %s110
      %p112 = scmp.eq.s32.totalorder %s23, 0
      %p113 = por %p111, %p112
      %s115 = sadd.s32 %s114, 1
      %p118 = scmp.eq.s32.totalorder %s17, 3
      %p119 = scmp.ne.s32.totalorder %s114, %s116
      %p120 = scmp.eq.s32.totalorder %s17, 0
      %p121 = por %p119, %p120
      %p122 = scmp.ne.s32.totalorder %s114, %s116
      %p123 = scmp.eq.s32.totalorder %s22, 3
      %p124 = por %p122, %p123
      %p125 = scmp.ne.s32.totalorder %s116, %s117
      %p126 = scmp.eq.s32.totalorder %s22, 0
      %p127 = por %p125, %p126
      %p128 = scmp.ne.s32.totalorder %s116, %s117
      %p129 = scmp.eq.s32.totalorder %s23, 3
      %p130 = por %p128, %p129
      %p132 = scmp.ne.s32.totalorder %s117, %s131
      %p133 = scmp.eq.s32.totalorder %s23, 0
      %p134 = por %p132, %p133
      %s136 = sadd.s32 %s135, 1
      %p139 = scmp.eq.s32.totalorder %s17, 3
      %p140 = scmp.ne.s32.totalorder %s135, %s137
      %p141 = scmp.eq.s32.totalorder %s17, 0
      %p142 = por %p140, %p141
      %p143 = scmp.ne.s32.totalorder %s135, %s137
      %p144 = scmp.eq.s32.totalorder %s22, 3
      %p145 = por %p143, %p144
      %p146 = scmp.ne.s32.totalorder %s137, %s138
      %p147 = scmp.eq.s32.totalorder %s22, 0
      %p148 = por %p146, %p147
      %p149 = scmp.ne.s32.totalorder %s137, %s138
      %p150 = scmp.eq.s32.totalorder %s23, 3
      %p151 = por %p149, %p150
      %p153 = scmp.ne.s32.totalorder %s138, %s152
      %p154 = scmp.eq.s32.totalorder %s23, 0
      %p155 = por %p153, %p154
      %s157 = sadd.s32 %s156, 1
      %p160 = scmp.eq.s32.totalorder %s17, 3
      %p161 = scmp.ne.s32.totalorder %s156, %s158
      %p162 = scmp.eq.s32.totalorder %s17, 0
      %p163 = por %p161, %p162
      %p164 = scmp.ne.s32.totalorder %s156, %s158
      %p165 = scmp.eq.s32.totalorder %s22, 3
      %p166 = por %p164, %p165
      %p167 = scmp.ne.s32.totalorder %s158, %s159
      %p168 = scmp.eq.s32.totalorder %s22, 0
      %p169 = por %p167, %p168
      %p170 = scmp.ne.s32.totalorder %s158, %s159
      %p171 = scmp.eq.s32.totalorder %s23, 3
      %p172 = por %p170, %p171
      %p174 = scmp.ne.s32.totalorder %s159, %s173
      %p175 = scmp.eq.s32.totalorder %s23, 0
      %p176 = por %p174, %p175
      %s178 = sadd.s32 %s177, 1
      %p181 = scmp.eq.s32.totalorder %s17, 3
      %p182 = scmp.ne.s32.totalorder %s177, %s179
      %p183 = scmp.eq.s32.totalorder %s17, 0
      %p184 = por %p182, %p183
      %p185 = scmp.ne.s32.totalorder %s177, %s179
      %p186 = scmp.eq.s32.totalorder %s22, 3
      %p187 = por %p185, %p186
      %p188 = scmp.ne.s32.totalorder %s179, %s180
      %p189 = scmp.eq.s32.totalorder %s22, 0
      %p190 = por %p188, %p189
      %p191 = scmp.ne.s32.totalorder %s179, %s180
      %p192 = scmp.eq.s32.totalorder %s23, 3
      %p193 = por %p191, %p192
      %p195 = scmp.ne.s32.totalorder %s180, %s194
      %p196 = scmp.eq.s32.totalorder %s23, 0
      %p197 = por %p195, %p196
      %s198 = ssub.s32 %s17, %s24
      %p199 = scmp.eq.s32.totalorder %s198, 0
      %s201 = sadd.s32 %s200, 1
      %s202 = scalar_select %p199, %s200, %s201
      %p205 = pneg %p199
      %p206 = scmp.eq.s32.totalorder %s17, 3
      %p207 = por %p205, %p206
      %p208 = scmp.ne.s32.totalorder %s200, %s203
      %p209 = scmp.eq.s32.totalorder %s17, 0
      %p210 = por %p208, %p209
      %p211 = scmp.ne.s32.totalorder %s200, %s203
      %p212 = scmp.eq.s32.totalorder %s22, 3
      %p213 = por %p211, %p212
      %p214 = scmp.ne.s32.totalorder %s203, %s204
      %p215 = scmp.eq.s32.totalorder %s22, 0
      %p216 = por %p214, %p215
      %p217 = scmp.ne.s32.totalorder %s203, %s204
      %p218 = scmp.eq.s32.totalorder %s23, 3
      %p219 = por %p217, %p218
      %p221 = scmp.ne.s32.totalorder %s204, %s220
      %p222 = scmp.eq.s32.totalorder %s23, 0
      %p223 = por %p221, %p222
      %p224 = scmp.le.s32.totalorder 1, %s17
      %p225 = scmp.lt.s32.totalorder %s17, 5
      %p226 = pnand %p224, %p225
      %p227 = pneg %p226
      // Predicated region
      $region9: #{tpu_custom_call.1} parent=5 // pred_check
        _
      $region10: #{tpu_custom_call.1} parent=5 // pred_check_branch
        %229 = sbr.rel (%p226) target = $region12
      $region11: #{tpu_custom_call.1} parent=5 // pred_region
        %s230 = ssub.s32 %s17, 1
        // Predicated region
        $region13: #{tpu_custom_call.1} parent=11 // pred_check
          %p231 = pneg %p64
        $region14: #{tpu_custom_call.1} parent=11 // pred_check_branch
          %233 = sbr.rel (%p231) target = $region16
        $region15: #{tpu_custom_call.1} parent=11 // pred_region
          _
        $region16: #{tpu_custom_call.1} parent=11 // pred_fallthru
          _
        // Predicated region
        $region17: #{tpu_custom_call.1} parent=11 // pred_check
          %p234 = pneg %p85
        $region18: #{tpu_custom_call.1} parent=11 // pred_check_branch
          %236 = sbr.rel (%p234) target = $region20
        $region19: #{tpu_custom_call.1} parent=11 // pred_region
          _
        $region20: #{tpu_custom_call.1} parent=11 // pred_fallthru
          _
        // Predicated region
        $region21: #{tpu_custom_call.1} parent=11 // pred_check
          %p237 = pneg %p106
        $region22: #{tpu_custom_call.1} parent=11 // pred_check_branch
          %239 = sbr.rel (%p237) target = $region24
        $region23: #{tpu_custom_call.1} parent=11 // pred_region
          _
        $region24: #{tpu_custom_call.1} parent=11 // pred_fallthru
          _
        // Predicated region
        $region25: #{tpu_custom_call.1} parent=11 // pred_check
          %p240 = pneg %p127
        $region26: #{tpu_custom_call.1} parent=11 // pred_check_branch
          %242 = sbr.rel (%p240) target = $region28
        $region27: #{tpu_custom_call.1} parent=11 // pred_region
          _
        $region28: #{tpu_custom_call.1} parent=11 // pred_fallthru
          _
        // Predicated region
        $region29: #{tpu_custom_call.1} parent=11 // pred_check
          %p243 = pneg %p148
        $region30: #{tpu_custom_call.1} parent=11 // pred_check_branch
          %245 = sbr.rel (%p243) target = $region32
        $region31: #{tpu_custom_call.1} parent=11 // pred_region
          _
        $region32: #{tpu_custom_call.1} parent=11 // pred_fallthru
          _
        // Predicated region
        $region33: #{tpu_custom_call.1} parent=11 // pred_check
          %p246 = pneg %p169
        $region34: #{tpu_custom_call.1} parent=11 // pred_check_branch
          %248 = sbr.rel (%p246) target = $region36
        $region35: #{tpu_custom_call.1} parent=11 // pred_region
          _
        $region36: #{tpu_custom_call.1} parent=11 // pred_fallthru
          _
        // Predicated region
        $region37: #{tpu_custom_call.1} parent=11 // pred_check
          %p249 = pneg %p190
        $region38: #{tpu_custom_call.1} parent=11 // pred_check_branch
          %251 = sbr.rel (%p249) target = $region40
        $region39: #{tpu_custom_call.1} parent=11 // pred_region
          _
        $region40: #{tpu_custom_call.1} parent=11 // pred_fallthru
          _
      $region12: #{tpu_custom_call.1} parent=5 // pred_fallthru
        _
      %p252 = scmp.lt.s32.totalorder %s17, 4
      // Predicated region
      $region41: #{tpu_custom_call.1} parent=5 // pred_check
        %p253 = pneg %p252
      $region42: #{tpu_custom_call.1} parent=5 // pred_check_branch
        %255 = sbr.rel (%p253) target = $region44
      $region43: #{tpu_custom_call.1} parent=5 // pred_region
        // Predicated region
        $region45: #{tpu_custom_call.1} parent=43 // pred_check
          %p256 = pneg %p37
        $region46: #{tpu_custom_call.1} parent=43 // pred_check_branch
          %258 = sbr.rel (%p256) target = $region48
        $region47: #{tpu_custom_call.1} parent=43 // pred_region
          %p259 = scmp.lt.s32.totalorder %s17, 3
          %s260 = scalar_select %p259, %s17, 3
          %s261 = smul.addr %s260, 4
          %s262 = scalar_lea.vmem %s0, %s261
        $region48: #{tpu_custom_call.1} parent=43 // pred_fallthru
          _
      $region44: #{tpu_custom_call.1} parent=5 // pred_fallthru
        _
      %p263 = scmp.le.s32.totalorder 1, %s17
      %p264 = scmp.lt.s32.totalorder %s17, 5
      %p265 = pnand %p263, %p264
      %p266 = pneg %p265
      // Predicated region
      $region49: #{tpu_custom_call.1} parent=5 // pred_check
        _
      $region50: #{tpu_custom_call.1} parent=5 // pred_check_branch
        %268 = sbr.rel (%p265) target = $region52
      $region51: #{tpu_custom_call.1} parent=5 // pred_region
        %s269 = ssub.s32 %s17, 1
        %p270 = scmp.lt.s32.totalorder %s22, 3
        %s271 = scalar_select %p270, %s22, 3
        %s272 = smul.addr %s271, 4
        %s273 = scalar_lea.vmem %s0, %s272
        %p274 = pneg %p43
        %p275 = pneg %p40
        %p276 = pneg %p64
        %p277 = pneg %p61
        %p278 = pneg %p85
        %p279 = pneg %p82
        %p280 = pneg %p106
        %p281 = pneg %p103
        %p282 = pneg %p127
        %p283 = pneg %p124
        %p284 = pneg %p148
        %p285 = pneg %p145
        %p286 = pneg %p169
        %p287 = pneg %p166
        %p288 = pneg %p190
        %p289 = pneg %p187
        %p290 = pneg %p216
        %p291 = pneg %p213
        %s292 = sand.u32 %s203, 1
        %s293 = scalar_lea.sflag [#allocation3], %s292
        %s294 = sand.u32 %s203, 1
        %s295 = smul.addr %s294, 4
        %s296 = scalar_lea.vmem [#allocation2], %s295
        %p297 = scmp.lt.s32.totalorder %s22, 3
        %s298 = scalar_select %p297, %s22, 3
        %s299 = smul.addr %s298, 4
        %s300 = scalar_lea.vmem %s0, %s299
        %v301 = vld [vmem:[%s300] sm:$0xf]
        %v302 = vld [vmem:[%s1] sm:$0xff]
        %v303 = vld [vmem:[%s1 + $0x8] sm:$0xff]
        %v304 = vld [vmem:[%s1 + $0x10] sm:$0xff]
        %v305 = vld [vmem:[%s1 + $0x18] sm:$0xff]
        %v306 = vld [vmem:[%s2] sm:$0xff]
        %v307 = vld [vmem:[%s2 + $0x8] sm:$0xff]
        %v308 = vld [vmem:[%s2 + $0x10] sm:$0xff]
        %v309 = vld [vmem:[%s2 + $0x18] sm:$0xff]
        %v310 = vld [vmem:[%s3] sm:$0xff]
        %v311 = vld [vmem:[%s3 + $0x8] sm:$0xff]
        %v312 = vld [vmem:[%s3 + $0x10] sm:$0xff]
        %v313 = vld [vmem:[%s3 + $0x18] sm:$0xff]
        %v314 = vld [vmem:[%s4] sm:$0xff]
        %v315 = vld [vmem:[%s4 + $0x8] sm:$0xff]
        %v316 = vld [vmem:[%s4 + $0x10] sm:$0xff]
        %v317 = vld [vmem:[%s4 + $0x18] sm:$0xff]
        %v318 = vld [vmem:[%s5] sm:$0xff]
        %v319 = vld [vmem:[%s5 + $0x8] sm:$0xff]
        %v320 = vld [vmem:[%s5 + $0x10] sm:$0xff]
        %v321 = vld [vmem:[%s5 + $0x18] sm:$0xff]
        %v322 = vld [vmem:[%s6] sm:$0xff]
        %v323 = vld [vmem:[%s6 + $0x8] sm:$0xff]
        %v324 = vld [vmem:[%s6 + $0x10] sm:$0xff]
        %v325 = vld [vmem:[%s6 + $0x18] sm:$0xff]
        %v326 = vld [vmem:[%s7] sm:$0xf]
        %328 = vset.pattern.permute.xlu0 0
        %329 = vperm.xlu0 %328, %v306
        %v330 = vpop.permute.xlu0 %329
        %333 = vset.pattern.permute.xlu0 0
        %334 = vperm.xlu0 %333, %v307
        %v335 = vpop.permute.xlu0 %334
        %338 = vset.pattern.permute.xlu0 0
        %339 = vperm.xlu0 %338, %v308
        %v340 = vpop.permute.xlu0 %339
        %343 = vset.pattern.permute.xlu0 0
        %344 = vperm.xlu0 %343, %v309
        %v345 = vpop.permute.xlu0 %344
        %vm347 = vcmask 31744
        %v349 = vsel %vm347, %v302, 0
        %v352 = vsel %vm347, %v303, 0
        %v355 = vsel %vm347, %v304, 0
        %v358 = vsel %vm347, %v305, 0
        %vm360 = vcmask 1043456
        %v362 = vsel %vm360, %v301, 0
        %364 = vmatprep.subr.mxu0 0.0
        %365 = vmatpush1.msra.mxu0 %v362
        %366 = vmatprep.subr.mxu0 0.0
        %367 = vmatpush1.msra.mxu0 0.0
        %368 = vmatprep.subr.mxu0 0.0
        %369 = vmatpush1.msra.mxu0 0.0
        %370 = vmatprep.subr.mxu0 0.0
        %371 = vmatpush1.msra.mxu0 0.0
        %372 = vmatprep.subr.mxu0 0.0
        %373 = vmatpush1.msra.mxu0 0.0
        %374 = vmatprep.subr.mxu0 0.0
        %375 = vmatpush1.msra.mxu0 0.0
        %376 = vmatprep.subr.mxu0 0.0
        %377 = vmatpush1.msra.mxu0 0.0
        %378 = vmatprep.subr.mxu0 0.0
        %379 = vmatpush1.msra.mxu0 0.0
        %380 = vmatprep.subr.mxu0 0.0
        %381 = vmatpush1.msra.mxu0 0.0
        %382 = vmatprep.subr.mxu0 0.0
        %383 = vmatpush1.msra.mxu0 0.0
        %384 = vmatprep.subr.mxu0 0.0
        %385 = vmatpush1.msra.mxu0 0.0
        %386 = vmatprep.subr.mxu0 0.0
        %387 = vmatpush1.msra.mxu0 0.0
        %388 = vmatprep.subr.mxu0 0.0
        %389 = vmatpush1.msra.mxu0 0.0
        %390 = vmatprep.subr.mxu0 0.0
        %391 = vmatpush1.msra.mxu0 0.0
        %392 = vmatprep.subr.mxu0 0.0
        %393 = vmatpush1.msra.mxu0 0.0
        %394 = vmatprep.subr.mxu0 0.0
        %395 = vmatpush1.msra.mxu0 0.0
        %396 = vmatprep.subr.mxu0 0.0
        %397 = vmatpush1.msra.mxu0 0.0
        %398 = vmatprep.subr.mxu0 0.0
        %399 = vmatpush1.msra.mxu0 0.0
        %400 = vmatprep.subr.mxu0 0.0
        %401 = vmatpush1.msra.mxu0 0.0
        %402 = vmatprep.subr.mxu0 0.0
        %403 = vmatpush1.msra.mxu0 0.0
        %404 = vmatprep.subr.mxu0 0.0
        %405 = vmatpush1.msra.mxu0 0.0
        %406 = vmatprep.subr.mxu0 0.0
        %407 = vmatpush1.msra.mxu0 0.0
        %408 = vmatprep.subr.mxu0 0.0
        %409 = vmatpush1.msra.mxu0 0.0
        %410 = vmatprep.subr.mxu0 0.0
        %411 = vmatpush1.msra.mxu0 0.0
        %412 = vmatprep.subr.mxu0 0.0
        %413 = vmatpush1.msra.mxu0 0.0
        %414 = vmatprep.subr.mxu0 0.0
        %415 = vmatpush1.msra.mxu0 0.0
        %416 = vmatprep.subr.mxu0 0.0
        %417 = vmatpush1.msra.mxu0 0.0
        %418 = vmatprep.subr.mxu0 0.0
        %419 = vmatpush1.msra.mxu0 0.0
        %420 = vmatprep.subr.mxu0 0.0
        %421 = vmatpush1.msra.mxu0 0.0
        %422 = vmatprep.subr.mxu0 0.0
        %423 = vmatpush1.msra.mxu0 0.0
        %424 = vmatprep.subr.mxu0 0.0
        %425 = vmatpush1.msra.mxu0 0.0
        %426 = vmatprep.subr.mxu0 0.0
        %427 = vmatpush1.msra.mxu0 0.0
        %428 = vmatprep.mubr.f32.mxu0 0.0
        %429 = vmatmul.mubr.f32.gmra.mrb[0].mxu0 %v349
        %v430 = vpop.f32.mrb[0].mxu0
        %v431 = vadd.f32 %v330, %v430
        %v432 = vpop.f32.mrb[0].mxu0
        %433 = vmatprep.mubr.f32.mxu0 0.0
        %434 = vmatmul.mubr.f32.gmra.mrb[0].mxu0 %v352
        %v435 = vpop.f32.mrb[0].mxu0
        %v436 = vadd.f32 %v335, %v435
        %v437 = vpop.f32.mrb[0].mxu0
        %438 = vmatprep.mubr.f32.mxu0 0.0
        %439 = vmatmul.mubr.f32.gmra.mrb[0].mxu0 %v355
        %v440 = vpop.f32.mrb[0].mxu0
        %v441 = vadd.f32 %v340, %v440
        %v442 = vpop.f32.mrb[0].mxu0
        %443 = vmatprep.mubr.f32.mxu0 0.0
        %444 = vmatmul.mubr.f32.gmra.mrb[0].mxu0 %v358
        %v445 = vpop.f32.mrb[0].mxu0
        %v446 = vadd.f32 %v345, %v445
        %v447 = vpop.f32.mrb[0].mxu0
        %448 = vdwg.mxu0
        %v449 = vmax.f32 %v431, 0.0
        %v450 = vmax.f32 %v436, 0.0
        %v451 = vmax.f32 %v441, 0.0
        %v452 = vmax.f32 %v446, 0.0
        %454 = vset.pattern.permute.xlu0 0
        %455 = vperm.xlu0 %454, %v318
        %v456 = vpop.permute.xlu0 %455
        %459 = vset.pattern.permute.xlu0 0
        %460 = vperm.xlu0 %459, %v319
        %v461 = vpop.permute.xlu0 %460
        %464 = vset.pattern.permute.xlu0 0
        %465 = vperm.xlu0 %464, %v320
        %v466 = vpop.permute.xlu0 %465
        %469 = vset.pattern.permute.xlu0 0
        %470 = vperm.xlu0 %469, %v321
        %v471 = vpop.permute.xlu0 %470
        %vm473 = vcmask 261120
        %v475 = vsel %vm473, %v310, 0
        %v478 = vsel %vm473, %v311, 0
        %v481 = vsel %vm473, %v312, 0
        %v484 = vsel %vm473, %v313, 0
        %486 = vmatprep.subr.mxu0 0.0
        %487 = vmatpush1.msra.mxu0 %v449
        %488 = vmatprep.subr.mxu0 0.0
        %489 = vmatpush1.msra.mxu0 %v450
        %490 = vmatprep.subr.mxu0 0.0
        %491 = vmatpush1.msra.mxu0 %v451
        %492 = vmatprep.subr.mxu0 0.0
        %493 = vmatpush1.msra.mxu0 %v452
        %494 = vmatprep.subr.mxu0 0.0
        %495 = vmatpush1.msra.mxu0 0.0
        %496 = vmatprep.subr.mxu0 0.0
        %497 = vmatpush1.msra.mxu0 0.0
        %498 = vmatprep.subr.mxu0 0.0
        %499 = vmatpush1.msra.mxu0 0.0
        %500 = vmatprep.subr.mxu0 0.0
        %501 = vmatpush1.msra.mxu0 0.0
        %502 = vmatprep.subr.mxu0 0.0
        %503 = vmatpush1.msra.mxu0 0.0
        %504 = vmatprep.subr.mxu0 0.0
        %505 = vmatpush1.msra.mxu0 0.0
        %506 = vmatprep.subr.mxu0 0.0
        %507 = vmatpush1.msra.mxu0 0.0
        %508 = vmatprep.subr.mxu0 0.0
        %509 = vmatpush1.msra.mxu0 0.0
        %510 = vmatprep.subr.mxu0 0.0
        %511 = vmatpush1.msra.mxu0 0.0
        %512 = vmatprep.subr.mxu0 0.0
        %513 = vmatpush1.msra.mxu0 0.0
        %514 = vmatprep.subr.mxu0 0.0
        %515 = vmatpush1.msra.mxu0 0.0
        %516 = vmatprep.subr.mxu0 0.0
        %517 = vmatpush1.msra.mxu0 0.0
        %518 = vmatprep.subr.mxu0 0.0
        %519 = vmatpush1.msra.mxu0 0.0
        %520 = vmatprep.subr.mxu0 0.0
        %521 = vmatpush1.msra.mxu0 0.0
        %522 = vmatprep.subr.mxu0 0.0
        %523 = vmatpush1.msra.mxu0 0.0
        %524 = vmatprep.subr.mxu0 0.0
        %525 = vmatpush1.msra.mxu0 0.0
        %526 = vmatprep.subr.mxu0 0.0
        %527 = vmatpush1.msra.mxu0 0.0
        %528 = vmatprep.subr.mxu0 0.0
        %529 = vmatpush1.msra.mxu0 0.0
        %530 = vmatprep.subr.mxu0 0.0
        %531 = vmatpush1.msra.mxu0 0.0
        %532 = vmatprep.subr.mxu0 0.0
        %533 = vmatpush1.msra.mxu0 0.0
        %534 = vmatprep.subr.mxu0 0.0
        %535 = vmatpush1.msra.mxu0 0.0
        %536 = vmatprep.subr.mxu0 0.0
        %537 = vmatpush1.msra.mxu0 0.0
        %538 = vmatprep.subr.mxu0 0.0
        %539 = vmatpush1.msra.mxu0 0.0
        %540 = vmatprep.subr.mxu0 0.0
        %541 = vmatpush1.msra.mxu0 0.0
        %542 = vmatprep.subr.mxu0 0.0
        %543 = vmatpush1.msra.mxu0 0.0
        %544 = vmatprep.subr.mxu0 0.0
        %545 = vmatpush1.msra.mxu0 0.0
        %546 = vmatprep.subr.mxu0 0.0
        %547 = vmatpush1.msra.mxu0 0.0
        %548 = vmatprep.subr.mxu0 0.0
        %549 = vmatpush1.msra.mxu0 0.0
        %550 = vmatprep.mubr.f32.mxu0 0.0
        %551 = vmatmul.mubr.f32.gmra.mrb[0].mxu0 %v475
        %v552 = vpop.f32.mrb[0].mxu0
        %v553 = vadd.f32 %v456, %v552
        %v554 = vpop.f32.mrb[0].mxu0
        %555 = vmatprep.mubr.f32.mxu0 0.0
        %556 = vmatmul.mubr.f32.gmra.mrb[0].mxu0 %v478
        %v557 = vpop.f32.mrb[0].mxu0
        %v558 = vadd.f32 %v461, %v557
        %v559 = vpop.f32.mrb[0].mxu0
        %560 = vmatprep.mubr.f32.mxu0 0.0
        %561 = vmatmul.mubr.f32.gmra.mrb[0].mxu0 %v481
        %v562 = vpop.f32.mrb[0].mxu0
        %v563 = vadd.f32 %v466, %v562
        %v564 = vpop.f32.mrb[0].mxu0
        %565 = vmatprep.mubr.f32.mxu0 0.0
        %566 = vmatmul.mubr.f32.gmra.mrb[0].mxu0 %v484
        %v567 = vpop.f32.mrb[0].mxu0
        %v568 = vadd.f32 %v471, %v567
        %v569 = vpop.f32.mrb[0].mxu0
        %570 = vdwg.mxu0
        %vm571 = vcmp.gt.f32.partialorder %v553, 0.0
        %vm572 = vcmp.gt.f32.partialorder %v558, 0.0
        %vm573 = vcmp.gt.f32.partialorder %v563, 0.0
        %vm574 = vcmp.gt.f32.partialorder %v568, 0.0
        %576 = vset.pattern.permute.xlu0 0
        %577 = vperm.xlu0 %576, %v322
        %v578 = vpop.permute.xlu0 %577
        %581 = vset.pattern.permute.xlu0 0
        %582 = vperm.xlu0 %581, %v323
        %v583 = vpop.permute.xlu0 %582
        %586 = vset.pattern.permute.xlu0 0
        %587 = vperm.xlu0 %586, %v324
        %v588 = vpop.permute.xlu0 %587
        %591 = vset.pattern.permute.xlu0 0
        %592 = vperm.xlu0 %591, %v325
        %v593 = vpop.permute.xlu0 %592
        %v595 = vsel %vm571, %v578, 0.0
        %v596 = vsel %vm572, %v583, 0.0
        %v597 = vsel %vm573, %v588, 0.0
        %v598 = vsel %vm574, %v593, 0.0
        %v600 = vsel %vm473, %v314, 0
        %v603 = vsel %vm473, %v315, 0
        %v606 = vsel %vm473, %v316, 0
        %v609 = vsel %vm473, %v317, 0
        %611 = vmatprep.subr.mxu0 0.0
        %612 = vmatpush1.msra.mxu0 %v595
        %613 = vmatprep.subr.mxu0 0.0
        %614 = vmatpush1.msra.mxu0 %v596
        %615 = vmatprep.subr.mxu0 0.0
        %616 = vmatpush1.msra.mxu0 %v597
        %617 = vmatprep.subr.mxu0 0.0
        %618 = vmatpush1.msra.mxu0 %v598
        %619 = vmatprep.subr.mxu0 0.0
        %620 = vmatpush1.msra.mxu0 0.0
        %621 = vmatprep.subr.mxu0 0.0
        %622 = vmatpush1.msra.mxu0 0.0
        %623 = vmatprep.subr.mxu0 0.0
        %624 = vmatpush1.msra.mxu0 0.0
        %625 = vmatprep.subr.mxu0 0.0
        %626 = vmatpush1.msra.mxu0 0.0
        %627 = vmatprep.subr.mxu0 0.0
        %628 = vmatpush1.msra.mxu0 0.0
        %629 = vmatprep.subr.mxu0 0.0
        %630 = vmatpush1.msra.mxu0 0.0
        %631 = vmatprep.subr.mxu0 0.0
        %632 = vmatpush1.msra.mxu0 0.0
        %633 = vmatprep.subr.mxu0 0.0
        %634 = vmatpush1.msra.mxu0 0.0
        %635 = vmatprep.subr.mxu0 0.0
        %636 = vmatpush1.msra.mxu0 0.0
        %637 = vmatprep.subr.mxu0 0.0
        %638 = vmatpush1.msra.mxu0 0.0
        %639 = vmatprep.subr.mxu0 0.0
        %640 = vmatpush1.msra.mxu0 0.0
        %641 = vmatprep.subr.mxu0 0.0
        %642 = vmatpush1.msra.mxu0 0.0
        %643 = vmatprep.subr.mxu0 0.0
        %644 = vmatpush1.msra.mxu0 0.0
        %645 = vmatprep.subr.mxu0 0.0
        %646 = vmatpush1.msra.mxu0 0.0
        %647 = vmatprep.subr.mxu0 0.0
        %648 = vmatpush1.msra.mxu0 0.0
        %649 = vmatprep.subr.mxu0 0.0
        %650 = vmatpush1.msra.mxu0 0.0
        %651 = vmatprep.subr.mxu0 0.0
        %652 = vmatpush1.msra.mxu0 0.0
        %653 = vmatprep.subr.mxu0 0.0
        %654 = vmatpush1.msra.mxu0 0.0
        %655 = vmatprep.subr.mxu0 0.0
        %656 = vmatpush1.msra.mxu0 0.0
        %657 = vmatprep.subr.mxu0 0.0
        %658 = vmatpush1.msra.mxu0 0.0
        %659 = vmatprep.subr.mxu0 0.0
        %660 = vmatpush1.msra.mxu0 0.0
        %661 = vmatprep.subr.mxu0 0.0
        %662 = vmatpush1.msra.mxu0 0.0
        %663 = vmatprep.subr.mxu0 0.0
        %664 = vmatpush1.msra.mxu0 0.0
        %665 = vmatprep.subr.mxu0 0.0
        %666 = vmatpush1.msra.mxu0 0.0
        %667 = vmatprep.subr.mxu0 0.0
        %668 = vmatpush1.msra.mxu0 0.0
        %669 = vmatprep.subr.mxu0 0.0
        %670 = vmatpush1.msra.mxu0 0.0
        %671 = vmatprep.subr.mxu0 0.0
        %672 = vmatpush1.msra.mxu0 0.0
        %673 = vmatprep.subr.mxu0 0.0
        %674 = vmatpush1.msra.mxu0 0.0
        %675 = vmatprep.mubr.f32.mxu0 0.0
        %676 = vmatmul.mubr.f32.gmra.mrb[0].mxu0 %v600
        %v677 = vpop.f32.mrb[0].mxu0
        %v678 = vadd.f32 0.0, %v677
        %v679 = vpop.f32.mrb[0].mxu0
        %680 = vmatprep.mubr.f32.mxu0 0.0
        %681 = vmatmul.mubr.f32.gmra.mrb[0].mxu0 %v603
        %v682 = vpop.f32.mrb[0].mxu0
        %v683 = vadd.f32 0.0, %v682
        %v684 = vpop.f32.mrb[0].mxu0
        %685 = vmatprep.mubr.f32.mxu0 0.0
        %686 = vmatmul.mubr.f32.gmra.mrb[0].mxu0 %v606
        %v687 = vpop.f32.mrb[0].mxu0
        %v688 = vadd.f32 0.0, %v687
        %v689 = vpop.f32.mrb[0].mxu0
        %690 = vmatprep.mubr.f32.mxu0 0.0
        %691 = vmatmul.mubr.f32.gmra.mrb[0].mxu0 %v609
        %v692 = vpop.f32.mrb[0].mxu0
        %v693 = vadd.f32 0.0, %v692
        %v694 = vpop.f32.mrb[0].mxu0
        %695 = vdwg.mxu0
        %v696 = vadd.f32 %v578, %v678
        %v697 = vadd.f32 %v583, %v683
        %v698 = vadd.f32 %v588, %v688
        %v699 = vadd.f32 %v593, %v693
        %vm700 = vcmp.gt.f32.partialorder %v431, 0.0
        %vm701 = vcmp.gt.f32.partialorder %v436, 0.0
        %vm702 = vcmp.gt.f32.partialorder %v441, 0.0
        %vm703 = vcmp.gt.f32.partialorder %v446, 0.0
        %v704 = vsel %vm700, %v696, 0.0
        %v705 = vsel %vm701, %v697, 0.0
        %v706 = vsel %vm702, %v698, 0.0
        %v707 = vsel %vm703, %v699, 0.0
        %v709 = vsel %vm473, %v326, 0
        %711 = vmatprep.subr.mxu0 0.0
        %712 = vmatpush1.msra.mxu0 %v704
        %713 = vmatprep.subr.mxu0 0.0
        %714 = vmatpush1.msra.mxu0 %v705
        %715 = vmatprep.subr.mxu0 0.0
        %716 = vmatpush1.msra.mxu0 %v706
        %717 = vmatprep.subr.mxu0 0.0
        %718 = vmatpush1.msra.mxu0 %v707
        %719 = vmatprep.subr.mxu0 0.0
        %720 = vmatpush1.msra.mxu0 0.0
        %721 = vmatprep.subr.mxu0 0.0
        %722 = vmatpush1.msra.mxu0 0.0
        %723 = vmatprep.subr.mxu0 0.0
        %724 = vmatpush1.msra.mxu0 0.0
        %725 = vmatprep.subr.mxu0 0.0
        %726 = vmatpush1.msra.mxu0 0.0
        %727 = vmatprep.subr.mxu0 0.0
        %728 = vmatpush1.msra.mxu0 0.0
        %729 = vmatprep.subr.mxu0 0.0
        %730 = vmatpush1.msra.mxu0 0.0
        %731 = vmatprep.subr.mxu0 0.0
        %732 = vmatpush1.msra.mxu0 0.0
        %733 = vmatprep.subr.mxu0 0.0
        %734 = vmatpush1.msra.mxu0 0.0
        %735 = vmatprep.subr.mxu0 0.0
        %736 = vmatpush1.msra.mxu0 0.0
        %737 = vmatprep.subr.mxu0 0.0
        %738 = vmatpush1.msra.mxu0 0.0
        %739 = vmatprep.subr.mxu0 0.0
        %740 = vmatpush1.msra.mxu0 0.0
        %741 = vmatprep.subr.mxu0 0.0
        %742 = vmatpush1.msra.mxu0 0.0
        %743 = vmatprep.subr.mxu0 0.0
        %744 = vmatpush1.msra.mxu0 0.0
        %745 = vmatprep.subr.mxu0 0.0
        %746 = vmatpush1.msra.mxu0 0.0
        %747 = vmatprep.subr.mxu0 0.0
        %748 = vmatpush1.msra.mxu0 0.0
        %749 = vmatprep.subr.mxu0 0.0
        %750 = vmatpush1.msra.mxu0 0.0
        %751 = vmatprep.subr.mxu0 0.0
        %752 = vmatpush1.msra.mxu0 0.0
        %753 = vmatprep.subr.mxu0 0.0
        %754 = vmatpush1.msra.mxu0 0.0
        %755 = vmatprep.subr.mxu0 0.0
        %756 = vmatpush1.msra.mxu0 0.0
        %757 = vmatprep.subr.mxu0 0.0
        %758 = vmatpush1.msra.mxu0 0.0
        %759 = vmatprep.subr.mxu0 0.0
        %760 = vmatpush1.msra.mxu0 0.0
        %761 = vmatprep.subr.mxu0 0.0
        %762 = vmatpush1.msra.mxu0 0.0
        %763 = vmatprep.subr.mxu0 0.0
        %764 = vmatpush1.msra.mxu0 0.0
        %765 = vmatprep.subr.mxu0 0.0
        %766 = vmatpush1.msra.mxu0 0.0
        %767 = vmatprep.subr.mxu0 0.0
        %768 = vmatpush1.msra.mxu0 0.0
        %769 = vmatprep.subr.mxu0 0.0
        %770 = vmatpush1.msra.mxu0 0.0
        %771 = vmatprep.subr.mxu0 0.0
        %772 = vmatpush1.msra.mxu0 0.0
        %773 = vmatprep.subr.mxu0 0.0
        %774 = vmatpush1.msra.mxu0 0.0
        %775 = vmatprep.mubr.f32.mxu0 0.0
        %776 = vmatmul.mubr.f32.gmra.mrb[0].mxu0 %v709
        %v777 = vpop.f32.mrb[0].mxu0
        %v778 = vadd.f32 0.0, %v777
        %v779 = vpop.f32.mrb[0].mxu0
        %780 = vdwg.mxu0
        %781 = vst [vmem:[%s296] sm:$0xf] %v778
        %s782 = sand.u32 %s203, 1
        %s783 = scalar_lea.sflag [#allocation3], %s782
        %s784 = sand.u32 %s203, 1
        %s785 = smul.addr %s784, 4
        %s786 = scalar_lea.vmem [#allocation2], %s785
        // Predicated region
        $region53: #{tpu_custom_call.1} parent=51 // pred_check
          %p787 = pneg %p213
        $region54: #{tpu_custom_call.1} parent=51 // pred_check_branch
          %789 = sbr.rel (%p787) target = $region56
        $region55: #{tpu_custom_call.1} parent=51 // pred_region
          %s791 = ssub.s32 64, 64
          %792 = vsyncadd %s783, %s791
          %s793 = smul.addr %s22, 64
          %s794 = scalar_lea.hbm %s8, %s793
          %s796 = sshll.u32 %s786, 4
          %s797 = int_to_ptr.vmem [resolvable:$true] %s796
          %799 = dma.vmem_to_hbm [thread:$0]  %s797, 64, %s794, %s783
        $region56: #{tpu_custom_call.1} parent=51 // pred_fallthru
          _
      $region52: #{tpu_custom_call.1} parent=5 // pred_fallthru
        _
      %p800 = scmp.le.s32.totalorder 2, %s17
      // Predicated region
      $region57: #{tpu_custom_call.1} parent=5 // pred_check
        %p801 = pneg %p800
      $region58: #{tpu_custom_call.1} parent=5 // pred_check_branch
        %803 = sbr.rel (%p801) target = $region60
      $region59: #{tpu_custom_call.1} parent=5 // pred_region
        %s804 = ssub.s32 %s17, 2
        // Predicated region
        $region61: #{tpu_custom_call.1} parent=59 // pred_check
          %p805 = pneg %p219
        $region62: #{tpu_custom_call.1} parent=59 // pred_check_branch
          %807 = sbr.rel (%p805) target = $region64
        $region63: #{tpu_custom_call.1} parent=59 // pred_region
          %s808 = sand.u32 %s204, 1
          %s809 = scalar_lea.sflag [#allocation3], %s808
          %s810 = sand.u32 %s204, 1
          %s811 = smul.addr %s810, 4
          %s812 = scalar_lea.vmem [#allocation2], %s811
          %813 = dma.done %s809, 64
        $region64: #{tpu_custom_call.1} parent=59 // pred_fallthru
          _
      $region60: #{tpu_custom_call.1} parent=5 // pred_fallthru
        _
    $region6: #{tpu_custom_call.1} parent=1 // loop_footer
      %s21 = sadd.s32 1, %s17
    $region7: #{tpu_custom_call.1} parent=1 // loop_footer_branch
      %16 = sbr.rel target = $region3
    $region8: #{tpu_custom_call.1} parent=1 // loop_exit
      _
    %814 = vsyncpa [#allocation3], 1
    %s815 = scalar_lea.sflag [#allocation3], 1
    %816 = vsyncpa %s815, 1

// kernel: tpu_custom_call.1
$region0: #{tpu_custom_call.1}
  #allocation0 [shape = 'u32[]', space=smem, size = 0x4, offset = 0x4, fixed_abs, tag = 'smem constant byte address 0x4 - core index']
  #allocation1 [shape = 'u32[144,128]{1,0:T(1,128)}', space=vmem, size = 0x12000, scoped, tag = 'internal scratch']
  %s0 = inlined_call_operand.vmem [shape: f32[4,512], index: 0, kind: input, shape index: {}]
  %s1 = inlined_call_operand.vmem [shape: f32[32,4], index: 1, kind: input, shape index: {}]
  %s2 = inlined_call_operand.vmem [shape: f32[32,1], index: 2, kind: input, shape index: {}]
  %s3 = inlined_call_operand.vmem [shape: f32[32,32], index: 3, kind: input, shape index: {}]
  %s4 = inlined_call_operand.vmem [shape: f32[32,32], index: 4, kind: input, shape index: {}]
  %s5 = inlined_call_operand.vmem [shape: f32[32,1], index: 5, kind: input, shape index: {}]
  %s6 = inlined_call_operand.vmem [shape: f32[32,1], index: 6, kind: input, shape index: {}]
  %s7 = inlined_call_operand.vmem [shape: f32[4,32], index: 7, kind: input, shape index: {}]
  %s8 = inlined_call_operand.hbm [shape: f32[4,512], index: 8, kind: output, shape index: {}]
  %s9 = sld [smem:[#allocation0]]
  $region65: #{tpu_custom_call.1} parent=0
    _
  %s11 = ssub.s32 1, %s9
  %s12 = scalar_select 0, %s11, %s9
  $region1: #{tpu_custom_call.1} parent=0
    #allocation2 [shape = 'u8[4096]{0}', space=vmem, size = 0x1000, scoped, tag = 'output window, operand 0']
    #allocation3 [shape = 's32[2]{0}', space=sflag, size = 0x8, scoped, tag = 'scoped memory for tpu_custom_call.1']
    %13 = vsyncpa [#allocation3], 0
    %s14 = scalar_lea.sflag [#allocation3], 1
    %15 = vsyncpa %s14, 0
    loop: start=0, step=1, limit=6
    $region2: #{tpu_custom_call.1} parent=1 // loop_pre_header
      _
    $region3: #{tpu_custom_call.1} parent=1 // loop_header
      %s17 = sphi 0, %s21
      %p18 = scmp.ge.s32.totalorder %s17, 6
      %s27 = sphi 0, %s29
      %s30 = sphi 0, %s27
      %s31 = sphi 0, %s30
      %s47 = sphi 0, %s31
      %s51 = sphi 0, %s51
      %s53 = sphi 0, %s51
      %s54 = sphi 0, %s53
      %s68 = sphi 0, %s54
      %s72 = sphi 0, %s72
      %s74 = sphi 0, %s72
      %s75 = sphi 0, %s74
      %s89 = sphi 0, %s75
      %s93 = sphi 0, %s93
      %s95 = sphi 0, %s93
      %s96 = sphi 0, %s95
      %s110 = sphi 0, %s96
      %s114 = sphi 0, %s114
      %s116 = sphi 0, %s114
      %s117 = sphi 0, %s116
      %s131 = sphi 0, %s117
      %s135 = sphi 0, %s135
      %s137 = sphi 0, %s135
      %s138 = sphi 0, %s137
      %s152 = sphi 0, %s138
      %s156 = sphi 0, %s156
      %s158 = sphi 0, %s156
      %s159 = sphi 0, %s158
      %s173 = sphi 0, %s159
      %s177 = sphi 0, %s177
      %s179 = sphi 0, %s177
      %s180 = sphi 0, %s179
      %s194 = sphi 0, %s180
      %s200 = sphi 0, %s202
      %s203 = sphi 0, %s200
      %s204 = sphi 0, %s203
      %s220 = sphi 0, %s204
    $region4: #{tpu_custom_call.1} parent=1 // loop_header_branch
      %20 = sbr.rel (%p18) target = $region8
    $region5: #{tpu_custom_call.1} parent=1 // loop_body
      %s22 = ssub.s32 %s17, 1
      %s23 = ssub.s32 %s17, 2
      %s24 = sadd.s32 %s17, 1
      %s25 = ssub.s32 %s17, %s24
      %p26 = scmp.eq.s32.totalorder %s25, 0
      %s28 = sadd.s32 %s27, 1
      %s29 = scalar_select %p26, %s27, %s28
      %p32 = pneg %p26
      %p33 = scmp.eq.s32.totalorder %s17, 3
      %p34 = por %p32, %p33
      %p35 = scmp.ne.s32.totalorder %s27, %s30
      %p36 = scmp.eq.s32.totalorder %s17, 0
      %p37 = por %p35, %p36
      %p38 = scmp.ne.s32.totalorder %s27, %s30
      %p39 = scmp.eq.s32.totalorder %s22, 3
      %p40 = por %p38, %p39
      %p41 = scmp.ne.s32.totalorder %s30, %s31
      %p42 = scmp.eq.s32.totalorder %s22, 0
      %p43 = por %p41, %p42
      %p44 = scmp.ne.s32.totalorder %s30, %s31
      %p45 = scmp.eq.s32.totalorder %s23, 3
      %p46 = por %p44, %p45
      %p48 = scmp.ne.s32.totalorder %s31, %s47
      %p49 = scmp.eq.s32.totalorder %s23, 0
      %p50 = por %p48, %p49
      %s52 = sadd.s32 %s51, 1
      %p55 = scmp.eq.s32.totalorder %s17, 3
      %p56 = scmp.ne.s32.totalorder %s51, %s53
      %p57 = scmp.eq.s32.totalorder %s17, 0
      %p58 = por %p56, %p57
      %p59 = scmp.ne.s32.totalorder %s51, %s53
      %p60 = scmp.eq.s32.totalorder %s22, 3
      %p61 = por %p59, %p60
      %p62 = scmp.ne.s32.totalorder %s53, %s54
      %p63 = scmp.eq.s32.totalorder %s22, 0
      %p64 = por %p62, %p63
      %p65 = scmp.ne.s32.totalorder %s53, %s54
      %p66 = scmp.eq.s32.totalorder %s23, 3
      %p67 = por %p65, %p66
      %p69 = scmp.ne.s32.totalorder %s54, %s68
      %p70 = scmp.eq.s32.totalorder %s23, 0
      %p71 = por %p69, %p70
      %s73 = sadd.s32 %s72, 1
      %p76 = scmp.eq.s32.totalorder %s17, 3
      %p77 = scmp.ne.s32.totalorder %s72, %s74
      %p78 = scmp.eq.s32.totalorder %s17, 0
      %p79 = por %p77, %p78
      %p80 = scmp.ne.s32.totalorder %s72, %s74
      %p81 = scmp.eq.s32.totalorder %s22, 3
      %p82 = por %p80, %p81
      %p83 = scmp.ne.s32.totalorder %s74, %s75
      %p84 = scmp.eq.s32.totalorder %s22, 0
      %p85 = por %p83, %p84
      %p86 = scmp.ne.s32.totalorder %s74, %s75
      %p87 = scmp.eq.s32.totalorder %s23, 3
      %p88 = por %p86, %p87
      %p90 = scmp.ne.s32.totalorder %s75, %s89
      %p91 = scmp.eq.s32.totalorder %s23, 0
      %p92 = por %p90, %p91
      %s94 = sadd.s32 %s93, 1
      %p97 = scmp.eq.s32.totalorder %s17, 3
      %p98 = scmp.ne.s32.totalorder %s93, %s95
      %p99 = scmp.eq.s32.totalorder %s17, 0
      %p100 = por %p98, %p99
      %p101 = scmp.ne.s32.totalorder %s93, %s95
      %p102 = scmp.eq.s32.totalorder %s22, 3
      %p103 = por %p101, %p102
      %p104 = scmp.ne.s32.totalorder %s95, %s96
      %p105 = scmp.eq.s32.totalorder %s22, 0
      %p106 = por %p104, %p105
      %p107 = scmp.ne.s32.totalorder %s95, %s96
      %p108 = scmp.eq.s32.totalorder %s23, 3
      %p109 = por %p107, %p108
      %p111 = scmp.ne.s32.totalorder %s96, %s110
      %p112 = scmp.eq.s32.totalorder %s23, 0
      %p113 = por %p111, %p112
      %s115 = sadd.s32 %s114, 1
      %p118 = scmp.eq.s32.totalorder %s17, 3
      %p119 = scmp.ne.s32.totalorder %s114, %s116
      %p120 = scmp.eq.s32.totalorder %s17, 0
      %p121 = por %p119, %p120
      %p122 = scmp.ne.s32.totalorder %s114, %s116
      %p123 = scmp.eq.s32.totalorder %s22, 3
      %p124 = por %p122, %p123
      %p125 = scmp.ne.s32.totalorder %s116, %s117
      %p126 = scmp.eq.s32.totalorder %s22, 0
      %p127 = por %p125, %p126
      %p128 = scmp.ne.s32.totalorder %s116, %s117
      %p129 = scmp.eq.s32.totalorder %s23, 3
      %p130 = por %p128, %p129
      %p132 = scmp.ne.s32.totalorder %s117, %s131
      %p133 = scmp.eq.s32.totalorder %s23, 0
      %p134 = por %p132, %p133
      %s136 = sadd.s32 %s135, 1
      %p139 = scmp.eq.s32.totalorder %s17, 3
      %p140 = scmp.ne.s32.totalorder %s135, %s137
      %p141 = scmp.eq.s32.totalorder %s17, 0
      %p142 = por %p140, %p141
      %p143 = scmp.ne.s32.totalorder %s135, %s137
      %p144 = scmp.eq.s32.totalorder %s22, 3
      %p145 = por %p143, %p144
      %p146 = scmp.ne.s32.totalorder %s137, %s138
      %p147 = scmp.eq.s32.totalorder %s22, 0
      %p148 = por %p146, %p147
      %p149 = scmp.ne.s32.totalorder %s137, %s138
      %p150 = scmp.eq.s32.totalorder %s23, 3
      %p151 = por %p149, %p150
      %p153 = scmp.ne.s32.totalorder %s138, %s152
      %p154 = scmp.eq.s32.totalorder %s23, 0
      %p155 = por %p153, %p154
      %s157 = sadd.s32 %s156, 1
      %p160 = scmp.eq.s32.totalorder %s17, 3
      %p161 = scmp.ne.s32.totalorder %s156, %s158
      %p162 = scmp.eq.s32.totalorder %s17, 0
      %p163 = por %p161, %p162
      %p164 = scmp.ne.s32.totalorder %s156, %s158
      %p165 = scmp.eq.s32.totalorder %s22, 3
      %p166 = por %p164, %p165
      %p167 = scmp.ne.s32.totalorder %s158, %s159
      %p168 = scmp.eq.s32.totalorder %s22, 0
      %p169 = por %p167, %p168
      %p170 = scmp.ne.s32.totalorder %s158, %s159
      %p171 = scmp.eq.s32.totalorder %s23, 3
      %p172 = por %p170, %p171
      %p174 = scmp.ne.s32.totalorder %s159, %s173
      %p175 = scmp.eq.s32.totalorder %s23, 0
      %p176 = por %p174, %p175
      %s178 = sadd.s32 %s177, 1
      %p181 = scmp.eq.s32.totalorder %s17, 3
      %p182 = scmp.ne.s32.totalorder %s177, %s179
      %p183 = scmp.eq.s32.totalorder %s17, 0
      %p184 = por %p182, %p183
      %p185 = scmp.ne.s32.totalorder %s177, %s179
      %p186 = scmp.eq.s32.totalorder %s22, 3
      %p187 = por %p185, %p186
      %p188 = scmp.ne.s32.totalorder %s179, %s180
      %p189 = scmp.eq.s32.totalorder %s22, 0
      %p190 = por %p188, %p189
      %p191 = scmp.ne.s32.totalorder %s179, %s180
      %p192 = scmp.eq.s32.totalorder %s23, 3
      %p193 = por %p191, %p192
      %p195 = scmp.ne.s32.totalorder %s180, %s194
      %p196 = scmp.eq.s32.totalorder %s23, 0
      %p197 = por %p195, %p196
      %s198 = ssub.s32 %s17, %s24
      %p199 = scmp.eq.s32.totalorder %s198, 0
      %s201 = sadd.s32 %s200, 1
      %s202 = scalar_select %p199, %s200, %s201
      %p205 = pneg %p199
      %p206 = scmp.eq.s32.totalorder %s17, 3
      %p207 = por %p205, %p206
      %p208 = scmp.ne.s32.totalorder %s200, %s203
      %p209 = scmp.eq.s32.totalorder %s17, 0
      %p210 = por %p208, %p209
      %p211 = scmp.ne.s32.totalorder %s200, %s203
      %p212 = scmp.eq.s32.totalorder %s22, 3
      %p213 = por %p211, %p212
      %p214 = scmp.ne.s32.totalorder %s203, %s204
      %p215 = scmp.eq.s32.totalorder %s22, 0
      %p216 = por %p214, %p215
      %p217 = scmp.ne.s32.totalorder %s203, %s204
      %p218 = scmp.eq.s32.totalorder %s23, 3
      %p219 = por %p217, %p218
      %p221 = scmp.ne.s32.totalorder %s204, %s220
      %p222 = scmp.eq.s32.totalorder %s23, 0
      %p223 = por %p221, %p222
      %p224 = scmp.le.s32.totalorder 1, %s17
      %p225 = scmp.lt.s32.totalorder %s17, 5
      %p226 = pnand %p224, %p225
      %p227 = pneg %p226
      // Predicated region
      $region9: #{tpu_custom_call.1} parent=5 // pred_check
        _
      $region10: #{tpu_custom_call.1} parent=5 // pred_check_branch
        %229 = sbr.rel (%p226) target = $region12
      $region11: #{tpu_custom_call.1} parent=5 // pred_region
        %s230 = ssub.s32 %s17, 1
        // Predicated region
        $region13: #{tpu_custom_call.1} parent=11 // pred_check
          %p231 = pneg %p64
        $region14: #{tpu_custom_call.1} parent=11 // pred_check_branch
          %233 = sbr.rel (%p231) target = $region16
        $region15: #{tpu_custom_call.1} parent=11 // pred_region
          _
        $region16: #{tpu_custom_call.1} parent=11 // pred_fallthru
          _
        // Predicated region
        $region17: #{tpu_custom_call.1} parent=11 // pred_check
          %p234 = pneg %p85
        $region18: #{tpu_custom_call.1} parent=11 // pred_check_branch
          %236 = sbr.rel (%p234) target = $region20
        $region19: #{tpu_custom_call.1} parent=11 // pred_region
          _
        $region20: #{tpu_custom_call.1} parent=11 // pred_fallthru
          _
        // Predicated region
        $region21: #{tpu_custom_call.1} parent=11 // pred_check
          %p237 = pneg %p106
        $region22: #{tpu_custom_call.1} parent=11 // pred_check_branch
          %239 = sbr.rel (%p237) target = $region24
        $region23: #{tpu_custom_call.1} parent=11 // pred_region
          _
        $region24: #{tpu_custom_call.1} parent=11 // pred_fallthru
          _
        // Predicated region
        $region25: #{tpu_custom_call.1} parent=11 // pred_check
          %p240 = pneg %p127
        $region26: #{tpu_custom_call.1} parent=11 // pred_check_branch
          %242 = sbr.rel (%p240) target = $region28
        $region27: #{tpu_custom_call.1} parent=11 // pred_region
          _
        $region28: #{tpu_custom_call.1} parent=11 // pred_fallthru
          _
        // Predicated region
        $region29: #{tpu_custom_call.1} parent=11 // pred_check
          %p243 = pneg %p148
        $region30: #{tpu_custom_call.1} parent=11 // pred_check_branch
          %245 = sbr.rel (%p243) target = $region32
        $region31: #{tpu_custom_call.1} parent=11 // pred_region
          _
        $region32: #{tpu_custom_call.1} parent=11 // pred_fallthru
          _
        // Predicated region
        $region33: #{tpu_custom_call.1} parent=11 // pred_check
          %p246 = pneg %p169
        $region34: #{tpu_custom_call.1} parent=11 // pred_check_branch
          %248 = sbr.rel (%p246) target = $region36
        $region35: #{tpu_custom_call.1} parent=11 // pred_region
          _
        $region36: #{tpu_custom_call.1} parent=11 // pred_fallthru
          _
        // Predicated region
        $region37: #{tpu_custom_call.1} parent=11 // pred_check
          %p249 = pneg %p190
        $region38: #{tpu_custom_call.1} parent=11 // pred_check_branch
          %251 = sbr.rel (%p249) target = $region40
        $region39: #{tpu_custom_call.1} parent=11 // pred_region
          _
        $region40: #{tpu_custom_call.1} parent=11 // pred_fallthru
          _
      $region12: #{tpu_custom_call.1} parent=5 // pred_fallthru
        _
      %p252 = scmp.lt.s32.totalorder %s17, 4
      // Predicated region
      $region41: #{tpu_custom_call.1} parent=5 // pred_check
        %p253 = pneg %p252
      $region42: #{tpu_custom_call.1} parent=5 // pred_check_branch
        %255 = sbr.rel (%p253) target = $region44
      $region43: #{tpu_custom_call.1} parent=5 // pred_region
        // Predicated region
        $region45: #{tpu_custom_call.1} parent=43 // pred_check
          %p256 = pneg %p37
        $region46: #{tpu_custom_call.1} parent=43 // pred_check_branch
          %258 = sbr.rel (%p256) target = $region48
        $region47: #{tpu_custom_call.1} parent=43 // pred_region
          %p259 = scmp.lt.s32.totalorder %s17, 3
          %s260 = scalar_select %p259, %s17, 3
          %s261 = smul.addr %s260, 4
          %s262 = scalar_lea.vmem %s0, %s261
        $region48: #{tpu_custom_call.1} parent=43 // pred_fallthru
          _
      $region44: #{tpu_custom_call.1} parent=5 // pred_fallthru
        _
      %p263 = scmp.le.s32.totalorder 1, %s17
      %p264 = scmp.lt.s32.totalorder %s17, 5
      %p265 = pnand %p263, %p264
      %p266 = pneg %p265
      // Predicated region
      $region49: #{tpu_custom_call.1} parent=5 // pred_check
        _
      $region50: #{tpu_custom_call.1} parent=5 // pred_check_branch
        %268 = sbr.rel (%p265) target = $region52
      $region51: #{tpu_custom_call.1} parent=5 // pred_region
        %s269 = ssub.s32 %s17, 1
        %p270 = scmp.lt.s32.totalorder %s22, 3
        %s271 = scalar_select %p270, %s22, 3
        %s272 = smul.addr %s271, 4
        %s273 = scalar_lea.vmem %s0, %s272
        %p274 = pneg %p43
        %p275 = pneg %p40
        %p276 = pneg %p64
        %p277 = pneg %p61
        %p278 = pneg %p85
        %p279 = pneg %p82
        %p280 = pneg %p106
        %p281 = pneg %p103
        %p282 = pneg %p127
        %p283 = pneg %p124
        %p284 = pneg %p148
        %p285 = pneg %p145
        %p286 = pneg %p169
        %p287 = pneg %p166
        %p288 = pneg %p190
        %p289 = pneg %p187
        %p290 = pneg %p216
        %p291 = pneg %p213
        %s292 = sand.u32 %s203, 1
        %s293 = scalar_lea.sflag [#allocation3], %s292
        %s294 = sand.u32 %s203, 1
        %s295 = smul.addr %s294, 4
        %s296 = scalar_lea.vmem [#allocation2], %s295
        %p297 = scmp.lt.s32.totalorder %s22, 3
        %s298 = scalar_select %p297, %s22, 3
        %s299 = smul.addr %s298, 4
        %s300 = scalar_lea.vmem %s0, %s299
        %v301 = vld [vmem:[%s300] sm:$0xf]
        %v302 = vld [vmem:[%s1] sm:$0xff]
        %v303 = vld [vmem:[%s1 + $0x8] sm:$0xff]
        %v304 = vld [vmem:[%s1 + $0x10] sm:$0xff]
        %v305 = vld [vmem:[%s1 + $0x18] sm:$0xff]
        %v306 = vld [vmem:[%s2] sm:$0xff]
        %v307 = vld [vmem:[%s2 + $0x8] sm:$0xff]
        %v308 = vld [vmem:[%s2 + $0x10] sm:$0xff]
        %v309 = vld [vmem:[%s2 + $0x18] sm:$0xff]
        %v310 = vld [vmem:[%s3] sm:$0xff]
        %v311 = vld [vmem:[%s3 + $0x8] sm:$0xff]
        %v312 = vld [vmem:[%s3 + $0x10] sm:$0xff]
        %v313 = vld [vmem:[%s3 + $0x18] sm:$0xff]
        %v314 = vld [vmem:[%s4] sm:$0xff]
        %v315 = vld [vmem:[%s4 + $0x8] sm:$0xff]
        %v316 = vld [vmem:[%s4 + $0x10] sm:$0xff]
        %v317 = vld [vmem:[%s4 + $0x18] sm:$0xff]
        %v318 = vld [vmem:[%s5] sm:$0xff]
        %v319 = vld [vmem:[%s5 + $0x8] sm:$0xff]
        %v320 = vld [vmem:[%s5 + $0x10] sm:$0xff]
        %v321 = vld [vmem:[%s5 + $0x18] sm:$0xff]
        %v322 = vld [vmem:[%s6] sm:$0xff]
        %v323 = vld [vmem:[%s6 + $0x8] sm:$0xff]
        %v324 = vld [vmem:[%s6 + $0x10] sm:$0xff]
        %v325 = vld [vmem:[%s6 + $0x18] sm:$0xff]
        %v326 = vld [vmem:[%s7] sm:$0xf]
        %328 = vset.pattern.permute.xlu0 0
        %329 = vperm.xlu0 %328, %v306
        %v330 = vpop.permute.xlu0 %329
        %333 = vset.pattern.permute.xlu0 0
        %334 = vperm.xlu0 %333, %v307
        %v335 = vpop.permute.xlu0 %334
        %338 = vset.pattern.permute.xlu0 0
        %339 = vperm.xlu0 %338, %v308
        %v340 = vpop.permute.xlu0 %339
        %343 = vset.pattern.permute.xlu0 0
        %344 = vperm.xlu0 %343, %v309
        %v345 = vpop.permute.xlu0 %344
        %vm347 = vcmask 31744
        %v349 = vsel %vm347, %v302, 0
        %v352 = vsel %vm347, %v303, 0
        %v355 = vsel %vm347, %v304, 0
        %v358 = vsel %vm347, %v305, 0
        %vm360 = vcmask 1043456
        %v362 = vsel %vm360, %v301, 0
        %364 = vmatprep.subr.mxu0 0.0
        %365 = vmatpush1.msra.mxu0 %v362
        %366 = vmatprep.subr.mxu0 0.0
        %367 = vmatpush1.msra.mxu0 0.0
        %368 = vmatprep.subr.mxu0 0.0
        %369 = vmatpush1.msra.mxu0 0.0
        %370 = vmatprep.subr.mxu0 0.0
        %371 = vmatpush1.msra.mxu0 0.0
        %372 = vmatprep.subr.mxu0 0.0
        %373 = vmatpush1.msra.mxu0 0.0
        %374 = vmatprep.subr.mxu0 0.0
        %375 = vmatpush1.msra.mxu0 0.0
        %376 = vmatprep.subr.mxu0 0.0
        %377 = vmatpush1.msra.mxu0 0.0
        %378 = vmatprep.subr.mxu0 0.0
        %379 = vmatpush1.msra.mxu0 0.0
        %380 = vmatprep.subr.mxu0 0.0
        %381 = vmatpush1.msra.mxu0 0.0
        %382 = vmatprep.subr.mxu0 0.0
        %383 = vmatpush1.msra.mxu0 0.0
        %384 = vmatprep.subr.mxu0 0.0
        %385 = vmatpush1.msra.mxu0 0.0
        %386 = vmatprep.subr.mxu0 0.0
        %387 = vmatpush1.msra.mxu0 0.0
        %388 = vmatprep.subr.mxu0 0.0
        %389 = vmatpush1.msra.mxu0 0.0
        %390 = vmatprep.subr.mxu0 0.0
        %391 = vmatpush1.msra.mxu0 0.0
        %392 = vmatprep.subr.mxu0 0.0
        %393 = vmatpush1.msra.mxu0 0.0
        %394 = vmatprep.subr.mxu0 0.0
        %395 = vmatpush1.msra.mxu0 0.0
        %396 = vmatprep.subr.mxu0 0.0
        %397 = vmatpush1.msra.mxu0 0.0
        %398 = vmatprep.subr.mxu0 0.0
        %399 = vmatpush1.msra.mxu0 0.0
        %400 = vmatprep.subr.mxu0 0.0
        %401 = vmatpush1.msra.mxu0 0.0
        %402 = vmatprep.subr.mxu0 0.0
        %403 = vmatpush1.msra.mxu0 0.0
        %404 = vmatprep.subr.mxu0 0.0
        %405 = vmatpush1.msra.mxu0 0.0
        %406 = vmatprep.subr.mxu0 0.0
        %407 = vmatpush1.msra.mxu0 0.0
        %408 = vmatprep.subr.mxu0 0.0
        %409 = vmatpush1.msra.mxu0 0.0
        %410 = vmatprep.subr.mxu0 0.0
        %411 = vmatpush1.msra.mxu0 0.0
        %412 = vmatprep.subr.mxu0 0.0
        %413 = vmatpush1.msra.mxu0 0.0
        %414 = vmatprep.subr.mxu0 0.0
        %415 = vmatpush1.msra.mxu0 0.0
        %416 = vmatprep.subr.mxu0 0.0
        %417 = vmatpush1.msra.mxu0 0.0
        %418 = vmatprep.subr.mxu0 0.0
        %419 = vmatpush1.msra.mxu0 0.0
        %420 = vmatprep.subr.mxu0 0.0
        %421 = vmatpush1.msra.mxu0 0.0
        %422 = vmatprep.subr.mxu0 0.0
        %423 = vmatpush1.msra.mxu0 0.0
        %424 = vmatprep.subr.mxu0 0.0
        %425 = vmatpush1.msra.mxu0 0.0
        %426 = vmatprep.subr.mxu0 0.0
        %427 = vmatpush1.msra.mxu0 0.0
        %428 = vmatprep.mubr.f32.mxu0 0.0
        %429 = vmatmul.mubr.f32.gmra.mrb[0].mxu0 %v349
        %v430 = vpop.f32.mrb[0].mxu0
        %v431 = vadd.f32 %v330, %v430
        %v432 = vpop.f32.mrb[0].mxu0
        %433 = vmatprep.mubr.f32.mxu0 0.0
        %434 = vmatmul.mubr.f32.gmra.mrb[0].mxu0 %v352
        %v435 = vpop.f32.mrb[0].mxu0
        %v436 = vadd.f32 %v335, %v435
        %v437 = vpop.f32.mrb[0].mxu0
        %438 = vmatprep.mubr.f32.mxu0 0.0
        %439 = vmatmul.mubr.f32.gmra.mrb[0].mxu0 %v355
        %v440 = vpop.f32.mrb[0].mxu0
        %v441 = vadd.f32 %v340, %v440
        %v442 = vpop.f32.mrb[0].mxu0
        %443 = vmatprep.mubr.f32.mxu0 0.0
        %444 = vmatmul.mubr.f32.gmra.mrb[0].mxu0 %v358
        %v445 = vpop.f32.mrb[0].mxu0
        %v446 = vadd.f32 %v345, %v445
        %v447 = vpop.f32.mrb[0].mxu0
        %448 = vdwg.mxu0
        %v449 = vmax.f32 %v431, 0.0
        %v450 = vmax.f32 %v436, 0.0
        %v451 = vmax.f32 %v441, 0.0
        %v452 = vmax.f32 %v446, 0.0
        %454 = vset.pattern.permute.xlu0 0
        %455 = vperm.xlu0 %454, %v318
        %v456 = vpop.permute.xlu0 %455
        %459 = vset.pattern.permute.xlu0 0
        %460 = vperm.xlu0 %459, %v319
        %v461 = vpop.permute.xlu0 %460
        %464 = vset.pattern.permute.xlu0 0
        %465 = vperm.xlu0 %464, %v320
        %v466 = vpop.permute.xlu0 %465
        %469 = vset.pattern.permute.xlu0 0
        %470 = vperm.xlu0 %469, %v321
        %v471 = vpop.permute.xlu0 %470
        %vm473 = vcmask 261120
        %v475 = vsel %vm473, %v310, 0
        %v478 = vsel %vm473, %v311, 0
        %v481 = vsel %vm473, %v312, 0
        %v484 = vsel %vm473, %v313, 0
        %486 = vmatprep.subr.mxu0 0.0
        %487 = vmatpush1.msra.mxu0 %v449
        %488 = vmatprep.subr.mxu0 0.0
        %489 = vmatpush1.msra.mxu0 %v450
        %490 = vmatprep.subr.mxu0 0.0
        %491 = vmatpush1.msra.mxu0 %v451
        %492 = vmatprep.subr.mxu0 0.0
        %493 = vmatpush1.msra.mxu0 %v452
        %494 = vmatprep.subr.mxu0 0.0
        %495 = vmatpush1.msra.mxu0 0.0
        %496 = vmatprep.subr.mxu0 0.0
        %497 = vmatpush1.msra.mxu0 0.0
        %498 = vmatprep.subr.mxu0 0.0
        %499 = vmatpush1.msra.mxu0 0.0
        %500 = vmatprep.subr.mxu0 0.0
        %501 = vmatpush1.msra.mxu0 0.0
        %502 = vmatprep.subr.mxu0 0.0
        %503 = vmatpush1.msra.mxu0 0.0
        %504 = vmatprep.subr.mxu0 0.0
        %505 = vmatpush1.msra.mxu0 0.0
        %506 = vmatprep.subr.mxu0 0.0
        %507 = vmatpush1.msra.mxu0 0.0
        %508 = vmatprep.subr.mxu0 0.0
        %509 = vmatpush1.msra.mxu0 0.0
        %510 = vmatprep.subr.mxu0 0.0
        %511 = vmatpush1.msra.mxu0 0.0
        %512 = vmatprep.subr.mxu0 0.0
        %513 = vmatpush1.msra.mxu0 0.0
        %514 = vmatprep.subr.mxu0 0.0
        %515 = vmatpush1.msra.mxu0 0.0
        %516 = vmatprep.subr.mxu0 0.0
        %517 = vmatpush1.msra.mxu0 0.0
        %518 = vmatprep.subr.mxu0 0.0
        %519 = vmatpush1.msra.mxu0 0.0
        %520 = vmatprep.subr.mxu0 0.0
        %521 = vmatpush1.msra.mxu0 0.0
        %522 = vmatprep.subr.mxu0 0.0
        %523 = vmatpush1.msra.mxu0 0.0
        %524 = vmatprep.subr.mxu0 0.0
        %525 = vmatpush1.msra.mxu0 0.0
        %526 = vmatprep.subr.mxu0 0.0
        %527 = vmatpush1.msra.mxu0 0.0
        %528 = vmatprep.subr.mxu0 0.0
        %529 = vmatpush1.msra.mxu0 0.0
        %530 = vmatprep.subr.mxu0 0.0
        %531 = vmatpush1.msra.mxu0 0.0
        %532 = vmatprep.subr.mxu0 0.0
        %533 = vmatpush1.msra.mxu0 0.0
        %534 = vmatprep.subr.mxu0 0.0
        %535 = vmatpush1.msra.mxu0 0.0
        %536 = vmatprep.subr.mxu0 0.0
        %537 = vmatpush1.msra.mxu0 0.0
        %538 = vmatprep.subr.mxu0 0.0
        %539 = vmatpush1.msra.mxu0 0.0
        %540 = vmatprep.subr.mxu0 0.0
        %541 = vmatpush1.msra.mxu0 0.0
        %542 = vmatprep.subr.mxu0 0.0
        %543 = vmatpush1.msra.mxu0 0.0
        %544 = vmatprep.subr.mxu0 0.0
        %545 = vmatpush1.msra.mxu0 0.0
        %546 = vmatprep.subr.mxu0 0.0
        %547 = vmatpush1.msra.mxu0 0.0
        %548 = vmatprep.subr.mxu0 0.0
        %549 = vmatpush1.msra.mxu0 0.0
        %550 = vmatprep.mubr.f32.mxu0 0.0
        %551 = vmatmul.mubr.f32.gmra.mrb[0].mxu0 %v475
        %v552 = vpop.f32.mrb[0].mxu0
        %v553 = vadd.f32 %v456, %v552
        %v554 = vpop.f32.mrb[0].mxu0
        %555 = vmatprep.mubr.f32.mxu0 0.0
        %556 = vmatmul.mubr.f32.gmra.mrb[0].mxu0 %v478
        %v557 = vpop.f32.mrb[0].mxu0
        %v558 = vadd.f32 %v461, %v557
        %v559 = vpop.f32.mrb[0].mxu0
        %560 = vmatprep.mubr.f32.mxu0 0.0
        %561 = vmatmul.mubr.f32.gmra.mrb[0].mxu0 %v481
        %v562 = vpop.f32.mrb[0].mxu0
        %v563 = vadd.f32 %v466, %v562
        %v564 = vpop.f32.mrb[0].mxu0
        %565 = vmatprep.mubr.f32.mxu0 0.0
        %566 = vmatmul.mubr.f32.gmra.mrb[0].mxu0 %v484
        %v567 = vpop.f32.mrb[0].mxu0
        %v568 = vadd.f32 %v471, %v567
        %v569 = vpop.f32.mrb[0].mxu0
        %570 = vdwg.mxu0
        %vm571 = vcmp.gt.f32.partialorder %v553, 0.0
        %vm572 = vcmp.gt.f32.partialorder %v558, 0.0
        %vm573 = vcmp.gt.f32.partialorder %v563, 0.0
        %vm574 = vcmp.gt.f32.partialorder %v568, 0.0
        %576 = vset.pattern.permute.xlu0 0
        %577 = vperm.xlu0 %576, %v322
        %v578 = vpop.permute.xlu0 %577
        %581 = vset.pattern.permute.xlu0 0
        %582 = vperm.xlu0 %581, %v323
        %v583 = vpop.permute.xlu0 %582
        %586 = vset.pattern.permute.xlu0 0
        %587 = vperm.xlu0 %586, %v324
        %v588 = vpop.permute.xlu0 %587
        %591 = vset.pattern.permute.xlu0 0
        %592 = vperm.xlu0 %591, %v325
        %v593 = vpop.permute.xlu0 %592
        %v595 = vsel %vm571, %v578, 0.0
        %v596 = vsel %vm572, %v583, 0.0
        %v597 = vsel %vm573, %v588, 0.0
        %v598 = vsel %vm574, %v593, 0.0
        %v600 = vsel %vm473, %v314, 0
        %v603 = vsel %vm473, %v315, 0
        %v606 = vsel %vm473, %v316, 0
        %v609 = vsel %vm473, %v317, 0
        %611 = vmatprep.subr.mxu0 0.0
        %612 = vmatpush1.msra.mxu0 %v595
        %613 = vmatprep.subr.mxu0 0.0
        %614 = vmatpush1.msra.mxu0 %v596
        %615 = vmatprep.subr.mxu0 0.0
        %616 = vmatpush1.msra.mxu0 %v597
        %617 = vmatprep.subr.mxu0 0.0
        %618 = vmatpush1.msra.mxu0 %v598
        %619 = vmatprep.subr.mxu0 0.0
        %620 = vmatpush1.msra.mxu0 0.0
        %621 = vmatprep.subr.mxu0 0.0
        %622 = vmatpush1.msra.mxu0 0.0
        %623 = vmatprep.subr.mxu0 0.0
        %624 = vmatpush1.msra.mxu0 0.0
        %625 = vmatprep.subr.mxu0 0.0
        %626 = vmatpush1.msra.mxu0 0.0
        %627 = vmatprep.subr.mxu0 0.0
        %628 = vmatpush1.msra.mxu0 0.0
        %629 = vmatprep.subr.mxu0 0.0
        %630 = vmatpush1.msra.mxu0 0.0
        %631 = vmatprep.subr.mxu0 0.0
        %632 = vmatpush1.msra.mxu0 0.0
        %633 = vmatprep.subr.mxu0 0.0
        %634 = vmatpush1.msra.mxu0 0.0
        %635 = vmatprep.subr.mxu0 0.0
        %636 = vmatpush1.msra.mxu0 0.0
        %637 = vmatprep.subr.mxu0 0.0
        %638 = vmatpush1.msra.mxu0 0.0
        %639 = vmatprep.subr.mxu0 0.0
        %640 = vmatpush1.msra.mxu0 0.0
        %641 = vmatprep.subr.mxu0 0.0
        %642 = vmatpush1.msra.mxu0 0.0
        %643 = vmatprep.subr.mxu0 0.0
        %644 = vmatpush1.msra.mxu0 0.0
        %645 = vmatprep.subr.mxu0 0.0
        %646 = vmatpush1.msra.mxu0 0.0
        %647 = vmatprep.subr.mxu0 0.0
        %648 = vmatpush1.msra.mxu0 0.0
        %649 = vmatprep.subr.mxu0 0.0
        %650 = vmatpush1.msra.mxu0 0.0
        %651 = vmatprep.subr.mxu0 0.0
        %652 = vmatpush1.msra.mxu0 0.0
        %653 = vmatprep.subr.mxu0 0.0
        %654 = vmatpush1.msra.mxu0 0.0
        %655 = vmatprep.subr.mxu0 0.0
        %656 = vmatpush1.msra.mxu0 0.0
        %657 = vmatprep.subr.mxu0 0.0
        %658 = vmatpush1.msra.mxu0 0.0
        %659 = vmatprep.subr.mxu0 0.0
        %660 = vmatpush1.msra.mxu0 0.0
        %661 = vmatprep.subr.mxu0 0.0
        %662 = vmatpush1.msra.mxu0 0.0
        %663 = vmatprep.subr.mxu0 0.0
        %664 = vmatpush1.msra.mxu0 0.0
        %665 = vmatprep.subr.mxu0 0.0
        %666 = vmatpush1.msra.mxu0 0.0
        %667 = vmatprep.subr.mxu0 0.0
        %668 = vmatpush1.msra.mxu0 0.0
        %669 = vmatprep.subr.mxu0 0.0
        %670 = vmatpush1.msra.mxu0 0.0
        %671 = vmatprep.subr.mxu0 0.0
        %672 = vmatpush1.msra.mxu0 0.0
        %673 = vmatprep.subr.mxu0 0.0
        %674 = vmatpush1.msra.mxu0 0.0
        %675 = vmatprep.mubr.f32.mxu0 0.0
        %676 = vmatmul.mubr.f32.gmra.mrb[0].mxu0 %v600
        %v677 = vpop.f32.mrb[0].mxu0
        %v678 = vadd.f32 0.0, %v677
        %v679 = vpop.f32.mrb[0].mxu0
        %680 = vmatprep.mubr.f32.mxu0 0.0
        %681 = vmatmul.mubr.f32.gmra.mrb[0].mxu0 %v603
        %v682 = vpop.f32.mrb[0].mxu0
        %v683 = vadd.f32 0.0, %v682
        %v684 = vpop.f32.mrb[0].mxu0
        %685 = vmatprep.mubr.f32.mxu0 0.0
        %686 = vmatmul.mubr.f32.gmra.mrb[0].mxu0 %v606
        %v687 = vpop.f32.mrb[0].mxu0
        %v688 = vadd.f32 0.0, %v687
        %v689 = vpop.f32.mrb[0].mxu0
        %690 = vmatprep.mubr.f32.mxu0 0.0
        %691 = vmatmul.mubr.f32.gmra.mrb[0].mxu0 %v609
        %v692 = vpop.f32.mrb[0].mxu0
        %v693 = vadd.f32 0.0, %v692
        %v694 = vpop.f32.mrb[0].mxu0
        %695 = vdwg.mxu0
        %v696 = vadd.f32 %v578, %v678
        %v697 = vadd.f32 %v583, %v683
        %v698 = vadd.f32 %v588, %v688
        %v699 = vadd.f32 %v593, %v693
        %vm700 = vcmp.gt.f32.partialorder %v431, 0.0
        %vm701 = vcmp.gt.f32.partialorder %v436, 0.0
        %vm702 = vcmp.gt.f32.partialorder %v441, 0.0
        %vm703 = vcmp.gt.f32.partialorder %v446, 0.0
        %v704 = vsel %vm700, %v696, 0.0
        %v705 = vsel %vm701, %v697, 0.0
        %v706 = vsel %vm702, %v698, 0.0
        %v707 = vsel %vm703, %v699, 0.0
        %v709 = vsel %vm473, %v326, 0
        %711 = vmatprep.subr.mxu0 0.0
        %712 = vmatpush1.msra.mxu0 %v704
        %713 = vmatprep.subr.mxu0 0.0
        %714 = vmatpush1.msra.mxu0 %v705
        %715 = vmatprep.subr.mxu0 0.0
        %716 = vmatpush1.msra.mxu0 %v706
        %717 = vmatprep.subr.mxu0 0.0
        %718 = vmatpush1.msra.mxu0 %v707
        %719 = vmatprep.subr.mxu0 0.0
        %720 = vmatpush1.msra.mxu0 0.0
        %721 = vmatprep.subr.mxu0 0.0
        %722 = vmatpush1.msra.mxu0 0.0
        %723 = vmatprep.subr.mxu0 0.0
        %724 = vmatpush1.msra.mxu0 0.0
        %725 = vmatprep.subr.mxu0 0.0
        %726 = vmatpush1.msra.mxu0 0.0
        %727 = vmatprep.subr.mxu0 0.0
        %728 = vmatpush1.msra.mxu0 0.0
        %729 = vmatprep.subr.mxu0 0.0
        %730 = vmatpush1.msra.mxu0 0.0
        %731 = vmatprep.subr.mxu0 0.0
        %732 = vmatpush1.msra.mxu0 0.0
        %733 = vmatprep.subr.mxu0 0.0
        %734 = vmatpush1.msra.mxu0 0.0
        %735 = vmatprep.subr.mxu0 0.0
        %736 = vmatpush1.msra.mxu0 0.0
        %737 = vmatprep.subr.mxu0 0.0
        %738 = vmatpush1.msra.mxu0 0.0
        %739 = vmatprep.subr.mxu0 0.0
        %740 = vmatpush1.msra.mxu0 0.0
        %741 = vmatprep.subr.mxu0 0.0
        %742 = vmatpush1.msra.mxu0 0.0
        %743 = vmatprep.subr.mxu0 0.0
        %744 = vmatpush1.msra.mxu0 0.0
        %745 = vmatprep.subr.mxu0 0.0
        %746 = vmatpush1.msra.mxu0 0.0
        %747 = vmatprep.subr.mxu0 0.0
        %748 = vmatpush1.msra.mxu0 0.0
        %749 = vmatprep.subr.mxu0 0.0
        %750 = vmatpush1.msra.mxu0 0.0
        %751 = vmatprep.subr.mxu0 0.0
        %752 = vmatpush1.msra.mxu0 0.0
        %753 = vmatprep.subr.mxu0 0.0
        %754 = vmatpush1.msra.mxu0 0.0
        %755 = vmatprep.subr.mxu0 0.0
        %756 = vmatpush1.msra.mxu0 0.0
        %757 = vmatprep.subr.mxu0 0.0
        %758 = vmatpush1.msra.mxu0 0.0
        %759 = vmatprep.subr.mxu0 0.0
        %760 = vmatpush1.msra.mxu0 0.0
        %761 = vmatprep.subr.mxu0 0.0
        %762 = vmatpush1.msra.mxu0 0.0
        %763 = vmatprep.subr.mxu0 0.0
        %764 = vmatpush1.msra.mxu0 0.0
        %765 = vmatprep.subr.mxu0 0.0
        %766 = vmatpush1.msra.mxu0 0.0
        %767 = vmatprep.subr.mxu0 0.0
        %768 = vmatpush1.msra.mxu0 0.0
        %769 = vmatprep.subr.mxu0 0.0
        %770 = vmatpush1.msra.mxu0 0.0
        %771 = vmatprep.subr.mxu0 0.0
        %772 = vmatpush1.msra.mxu0 0.0
        %773 = vmatprep.subr.mxu0 0.0
        %774 = vmatpush1.msra.mxu0 0.0
        %775 = vmatprep.mubr.f32.mxu0 0.0
        %776 = vmatmul.mubr.f32.gmra.mrb[0].mxu0 %v709
        %v777 = vpop.f32.mrb[0].mxu0
        %v778 = vadd.f32 0.0, %v777
        %v779 = vpop.f32.mrb[0].mxu0
        %780 = vdwg.mxu0
        %781 = vst [vmem:[%s296] sm:$0xf] %v778
        %s782 = sand.u32 %s203, 1
        %s783 = scalar_lea.sflag [#allocation3], %s782
        %s784 = sand.u32 %s203, 1
        %s785 = smul.addr %s784, 4
        %s786 = scalar_lea.vmem [#allocation2], %s785
        // Predicated region
        $region53: #{tpu_custom_call.1} parent=51 // pred_check
          %p787 = pneg %p213
        $region54: #{tpu_custom_call.1} parent=51 // pred_check_branch
          %789 = sbr.rel (%p787) target = $region56
        $region55: #{tpu_custom_call.1} parent=51 // pred_region
          %s791 = ssub.s32 64, 64
          %792 = vsyncadd %s783, %s791
          %s793 = smul.addr %s22, 64
          %s794 = scalar_lea.hbm %s8, %s793
          %s796 = sshll.u32 %s786, 4
          %s797 = int_to_ptr.vmem [resolvable:$true] %s796
          %799 = dma.vmem_to_hbm [thread:$0]  %s797, 64, %s794, %s783
        $region56: #{tpu_custom_call.1} parent=51 // pred_fallthru
          _
      $region52: #{tpu_custom_call.1} parent=5 // pred_fallthru
        _
      %p800 = scmp.le.s32.totalorder 2, %s17
      // Predicated region
      $region57: #{tpu_custom_call.1} parent=5 // pred_check
        %p801 = pneg %p800
      $region58: #{tpu_custom_call.1} parent=5 // pred_check_branch
        %803 = sbr.rel (%p801) target = $region60
      $region59: #{tpu_custom_call.1} parent=5 // pred_region
        %s804 = ssub.s32 %s17, 2
        // Predicated region
        $region61: #{tpu_custom_call.1} parent=59 // pred_check
          %p805 = pneg %p219
        $region62: #{tpu_custom_call.1} parent=59 // pred_check_branch
          %807 = sbr.rel (%p805) target = $region64
        $region63: #{tpu_custom_call.1} parent=59 // pred_region
          %s808 = sand.u32 %s204, 1
          %s809 = scalar_lea.sflag [#allocation3], %s808
          %s810 = sand.u32 %s204, 1
          %s811 = smul.addr %s810, 4
          %s812 = scalar_lea.vmem [#allocation2], %s811
          %813 = dma.done %s809, 64
        $region64: #{tpu_custom_call.1} parent=59 // pred_fallthru
          _
      $region60: #{tpu_custom_call.1} parent=5 // pred_fallthru
        _
    $region6: #{tpu_custom_call.1} parent=1 // loop_footer
      %s21 = sadd.s32 1, %s17
    $region7: #{tpu_custom_call.1} parent=1 // loop_footer_branch
      %16 = sbr.rel target = $region3
    $region8: #{tpu_custom_call.1} parent=1 // loop_exit
      _
    %814 = vsyncpa [#allocation3], 1
    %s815 = scalar_lea.sflag [#allocation3], 1
    %816 = vsyncpa %s815, 1

</llo_original>
